<compile_context>
chip_gen: v6e
topology: v6e:2x2x1
jax: 0.10.0
libtpu: 0.0.40
codegen_flags: <defaults>
</compile_context>

<pallas_src>
import jax
import jax.numpy as jnp
from jax import lax
from jax.experimental import pallas as pl
from jax.experimental.pallas import tpu as pltpu

KH = KW = 5
STRIDE = 2
PAD = 2
EPS = 1e-5


def _conv_stats_kernel(xee_ref, xeo_ref, xoe_ref, xoo_ref, w_ref, y_ref, stats_ref):
    # x??_ref  : (1, Hp2, Wp2, C) even/odd row/col phases of the zero-padded NHWC input
    # w_ref    : (25, C) depthwise taps, row index = kh*5 + kw
    # y_ref    : (1, TH, OW, C) conv output row-tile (unnormalized)
    # stats_ref: (1, 1, 2, C) per-tile [sum, sum_sq] over (TH, OW)
    _, TH, OW, C = y_ref.shape
    t = pl.program_id(1)
    row0 = pl.multiple_of(t * TH, TH)

    phases = ((xee_ref, xeo_ref), (xoe_ref, xoo_ref))  # [row parity][col parity]

    # Hoist ReLU and the (sublane-relayout) column shifts out of the 25-tap loop:
    # 10 distinct (row-phase, col-phase, col-shift) slabs, each loaded + ReLU'd once.
    # relu(0) == 0, so ReLU after zero-padding is equivalent to ReLU before padding.
    cols = {}
    for pr in range(2):
        nrows = TH + (2 if pr == 0 else 1)          # row shifts ar in {0,1,2} / {0,1}
        for pc in range(2):
            for ac in range(3 if pc == 0 else 2):   # col shifts needed for this parity
                slab = phases[pr][pc][0, pl.ds(row0, nrows), ac:ac + OW, :]
                cols[(pr, pc, ac)] = jnp.maximum(slab, 0.0)

    w_all = w_ref[...]                              # preload all 25 taps once
    acc = jnp.zeros((TH, OW, C), jnp.float32)
    for kh in range(KH):
        pr, ar = kh % 2, kh // 2
        for kw in range(KW):
            pc, ac = kw % 2, kw // 2
            patch = cols[(pr, pc, ac)][ar:ar + TH]  # major-axis offset: no relayout
            acc = acc + patch * w_all[kh * KW + kw, :]

    y_ref[0] = acc
    # Single-pass partial stats for BN (E[y^2] - mean^2 finalized outside).
    s1 = jnp.sum(acc, axis=(0, 1), keepdims=True)[0]         # (1, C)
    s2 = jnp.sum(acc * acc, axis=(0, 1), keepdims=True)[0]   # (1, C)
    stats_ref[0, 0, 0:1, :] = s1
    stats_ref[0, 0, 1:2, :] = s2


def _bn_apply_kernel(y_ref, scale_ref, shift_ref, o_ref):
    # y_ref/o_ref: (TR, OW*C) lane-dense slabs; scale/shift: (1, OW*C)
    # (per-channel affine pre-tiled OW times so broadcast lines up lane-wise).
    o_ref[...] = y_ref[...] * scale_ref[...] + shift_ref[...]


def _pick_row_tile(oh):
    # Largest divisor of OH not exceeding 16 keeps the per-block VMEM footprint
    # (10 hoisted slabs + accumulator) modest.
    return max(d for d in range(1, min(oh, 16) + 1) if oh % d == 0)


def _pick_apply_tile(rows, owc, max_bytes=4 << 20):
    # Largest multiple-of-8 divisor of `rows` whose block fits the byte budget
    # (satisfies the (8,128) sublane constraint); fall back to the full extent.
    best = None
    for d in range(8, rows + 1, 8):
        if rows % d == 0 and d * owc * 4 <= max_bytes:
            best = d
    return best if best is not None else rows


def relu_dwconv_bn(x_nchw, w_hwc, gamma, beta, *, row_tile=None):
    """x_nchw: [N, C, H, W] f32; w_hwc: [5, 5, C]; gamma/beta: [C]. Returns [N, C, OH, OW]."""
    N, C, H, W = x_nchw.shape
    assert H % 2 == 0 and W % 2 == 0, "phase decomposition assumes even H/W"
    OH = (H + 2 * PAD - KH) // STRIDE + 1
    OW = (W + 2 * PAD - KW) // STRIDE + 1
    Hp2 = (H + 2 * PAD) // 2
    Wp2 = (W + 2 * PAD) // 2
    if row_tile is None:
        row_tile = _pick_row_tile(OH)
    assert OH % row_tile == 0
    nT = OH // row_tile

    # Layout glue (pad + strided slices fuse with the NCHW->NHWC transpose in XLA):
    # even/odd row/col phases turn the stride-2 conv into unit-stride shifts in-kernel.
    x = jnp.transpose(x_nchw, (0, 2, 3, 1)).astype(jnp.float32)
    xpad = jnp.pad(x, ((0, 0), (PAD, PAD), (PAD, PAD), (0, 0)))
    x_ee = xpad[:, 0::2, 0::2, :]
    x_eo = xpad[:, 0::2, 1::2, :]
    x_oe = xpad[:, 1::2, 0::2, :]
    x_oo = xpad[:, 1::2, 1::2, :]

    w25 = w_hwc.reshape(KH * KW, C).astype(jnp.float32)

    phase_spec = pl.BlockSpec((1, Hp2, Wp2, C), lambda n, t: (n, 0, 0, 0))
    cparams = pltpu.CompilerParams(
        dimension_semantics=("parallel", "parallel"),   # megacore sharding
        vmem_limit_bytes=32 * 1024 * 1024)              # explicit budget (v7x: 64 MiB phys)

    # Pass 1: ReLU + depthwise conv + per-tile partial BN stats.
    y, stats = pl.pallas_call(
        _conv_stats_kernel,
        out_shape=(jax.ShapeDtypeStruct((N, OH, OW, C), jnp.float32),
                   jax.ShapeDtypeStruct((N, nT, 2, C), jnp.float32)),
        grid=(N, nT),
        in_specs=[phase_spec, phase_spec, phase_spec, phase_spec,
                  pl.BlockSpec((KH * KW, C), lambda n, t: (0, 0))],
        out_specs=(pl.BlockSpec((1, row_tile, OW, C), lambda n, t: (n, t, 0, 0)),
                   pl.BlockSpec((1, 1, 2, C), lambda n, t: (n, t, 0, 0))),
        compiler_params=cparams,
    )(x_ee, x_eo, x_oe, x_oo, w25)

    # Finalize training-mode BN stats: tiny (C,)-sized math, fold gamma/beta.
    count = N * OH * OW
    tot = jnp.sum(stats, axis=(0, 1))               # (2, C)
    mean = tot[0] / count
    var = tot[1] / count - mean * mean              # biased batch variance (single pass)
    scale = (gamma.astype(jnp.float32) * lax.rsqrt(var + EPS)).reshape(1, C)
    shift = (beta.astype(jnp.float32) - mean * scale[0]).reshape(1, C)

    # Pass 2: elementwise BN apply on a lane-dense 2-D view.
    #   (N, OH, OW, C) -> (N*OH, OW*C) is a free contiguous reshape; the output
    #   last dim becomes OW*C (>= 9 full vregs) instead of 144, eliminating the
    #   ~50% masked partial stores of a C-last elementwise kernel.
    R = N * OH
    OWC = OW * C
    y2 = y.reshape(R, OWC)
    scale_t = jnp.tile(scale, (1, OW))              # (1, OW*C): index ow*C+c -> scale[c]
    shift_t = jnp.tile(shift, (1, OW))
    TR = _pick_apply_tile(R, OWC)
    assert R % TR == 0

    out2 = pl.pallas_call(
        _bn_apply_kernel,
        out_shape=jax.ShapeDtypeStruct((R, OWC), jnp.float32),
        grid=(R // TR,),
        in_specs=[pl.BlockSpec((TR, OWC), lambda r: (r, 0)),
                  pl.BlockSpec((1, OWC), lambda r: (0, 0)),
                  pl.BlockSpec((1, OWC), lambda r: (0, 0))],
        out_specs=pl.BlockSpec((TR, OWC), lambda r: (r, 0)),
        compiler_params=pltpu.CompilerParams(
            dimension_semantics=("parallel",),
            vmem_limit_bytes=32 * 1024 * 1024),
    )(y2, scale_t, shift_t)

    out_nhwc = out2.reshape(N, OH, OW, C)
    # TODO(synk): C=144 still leaves a 16-lane remainder in the pass-1 compute
    # layout (channels on lanes); a 128+16 channel split was judged not worth
    # the extra grid overhead at these sizes.
    return jnp.transpose(out_nhwc, (0, 3, 1, 2))    # back to NCHW to match the module


def reference(x_nchw, w_hwc, gamma, beta):
    """Plain-JAX reference mirroring the PyTorch forward (training-mode BN)."""
    C = x_nchw.shape[1]
    x = jnp.maximum(x_nchw, 0.0)
    w_oihw = jnp.transpose(w_hwc, (2, 0, 1))[:, None, :, :]  # [C,1,5,5]
    y = lax.conv_general_dilated(
        x, w_oihw, window_strides=(STRIDE, STRIDE),
        padding=((PAD, PAD), (PAD, PAD)),
        dimension_numbers=('NCHW', 'OIHW', 'NCHW'),
        feature_group_count=C)
    mean = jnp.mean(y, axis=(0, 2, 3), keepdims=True)
    var = jnp.mean(jnp.square(y - mean), axis=(0, 2, 3), keepdims=True)
    return ((y - mean) * lax.rsqrt(var + EPS)
            * gamma[None, :, None, None] + beta[None, :, None, None])


if __name__ == "__main__":
    key = jax.random.PRNGKey(0)
    k1, k2, k3, k4 = jax.random.split(key, 4)

    # Small shapes consistent with the module (C must be 144 for the depthwise conv).
    N, C, H, W = 2, 144, 16, 16
    x = jax.random.normal(k1, (N, C, H, W), dtype=jnp.float32)

    # Deterministic synthetic parameters (module __init__ shapes).
    w = 0.1 * jax.random.normal(k2, (KH, KW, C), dtype=jnp.float32)
    gamma = 1.0 + 0.1 * jax.random.normal(k3, (C,), dtype=jnp.float32)
    beta = 0.1 * jax.random.normal(k4, (C,), dtype=jnp.float32)

    # row_tile=4 exercises both grid axes of pass 1 (grid = (N, OH//4) = (2, 2)).
    out = relu_dwconv_bn(x, w, gamma, beta, row_tile=4)
    out = jax.block_until_ready(out)

    ref = reference(x, w, gamma, beta)
    OH = (H + 2 * PAD - KH) // STRIDE + 1
    OW = (W + 2 * PAD - KW) // STRIDE + 1
    assert out.shape == (N, C, OH, OW)
    max_err = float(jnp.max(jnp.abs(out - ref)))
    assert jnp.allclose(out, ref, atol=1e-3, rtol=1e-3), f"max abs err {max_err}"
    print("KERNEL_OK")
</pallas_src>

<mosaic_0001>
module attributes {stable_mosaic.version = 11 : i64} {
  func.func @_conv_stats_kernel(%arg0: i32, %arg1: i32, %arg2: memref<1x10x10x144xf32, #tpu.memory_space<vmem>>, %arg3: memref<1x10x10x144xf32, #tpu.memory_space<vmem>>, %arg4: memref<1x10x10x144xf32, #tpu.memory_space<vmem>>, %arg5: memref<1x10x10x144xf32, #tpu.memory_space<vmem>>, %arg6: memref<25x144xf32, #tpu.memory_space<vmem>>, %arg7: memref<1x4x8x144xf32, #tpu.memory_space<vmem>>, %arg8: memref<1x1x2x144xf32, #tpu.memory_space<vmem>>) attributes {dimension_semantics = [#tpu.dimension_semantics<parallel>, #tpu.dimension_semantics<parallel>], iteration_bounds = array<i64: 2, 2>, scalar_prefetch = 0 : i64, scratch_operands = 0 : i64, tpu.core_type = #tpu.core_type<tc>, window_params = [{transform_indices = @transform_0, window_bounds = array<i64: 1, 10, 10, 144>}, {transform_indices = @transform_1, window_bounds = array<i64: 1, 10, 10, 144>}, {transform_indices = @transform_2, window_bounds = array<i64: 1, 10, 10, 144>}, {transform_indices = @transform_3, window_bounds = array<i64: 1, 10, 10, 144>}, {pipeline_mode = #tpu.pipeline_mode<synchronous>, transform_indices = @transform_4, window_bounds = array<i64: 25, 144>}, {transform_indices = @transform_5, window_bounds = array<i64: 1, 4, 8, 144>}, {transform_indices = @transform_6, window_bounds = array<i64: 1, 1, 2, 144>}]} {
    %c4_i32 = arith.constant 4 : i32
    %0 = arith.muli %arg1, %c4_i32 : i32
    %1 = tpu.assume_multiple %0, 4 : i32
    %c0 = arith.constant 0 : index
    %2 = arith.index_cast %1 : i32 to index
    %c0_0 = arith.constant 0 : index
    %c0_1 = arith.constant 0 : index
    %3 = vector.load %arg2[%c0, %2, %c0_0, %c0_1] : memref<1x10x10x144xf32, #tpu.memory_space<vmem>>, vector<1x6x8x144xf32>
    %4 = vector.shape_cast %3 : vector<1x6x8x144xf32> to vector<6x8x144xf32>
    %cst = arith.constant 0.000000e+00 : f32
    %5 = vector.broadcast %cst : f32 to vector<6x8x144xf32>
    %6 = arith.maximumf %4, %5 : vector<6x8x144xf32>
    %c0_2 = arith.constant 0 : index
    %7 = arith.index_cast %1 : i32 to index
    %c1 = arith.constant 1 : index
    %c0_3 = arith.constant 0 : index
    %8 = vector.load %arg2[%c0_2, %7, %c1, %c0_3] : memref<1x10x10x144xf32, #tpu.memory_space<vmem>>, vector<1x6x8x144xf32>
    %9 = vector.shape_cast %8 : vector<1x6x8x144xf32> to vector<6x8x144xf32>
    %cst_4 = arith.constant 0.000000e+00 : f32
    %10 = vector.broadcast %cst_4 : f32 to vector<6x8x144xf32>
    %11 = arith.maximumf %9, %10 : vector<6x8x144xf32>
    %c0_5 = arith.constant 0 : index
    %12 = arith.index_cast %1 : i32 to index
    %c2 = arith.constant 2 : index
    %c0_6 = arith.constant 0 : index
    %13 = vector.load %arg2[%c0_5, %12, %c2, %c0_6] : memref<1x10x10x144xf32, #tpu.memory_space<vmem>>, vector<1x6x8x144xf32>
    %14 = vector.shape_cast %13 : vector<1x6x8x144xf32> to vector<6x8x144xf32>
    %cst_7 = arith.constant 0.000000e+00 : f32
    %15 = vector.broadcast %cst_7 : f32 to vector<6x8x144xf32>
    %16 = arith.maximumf %14, %15 : vector<6x8x144xf32>
    %c0_8 = arith.constant 0 : index
    %17 = arith.index_cast %1 : i32 to index
    %c0_9 = arith.constant 0 : index
    %c0_10 = arith.constant 0 : index
    %18 = vector.load %arg3[%c0_8, %17, %c0_9, %c0_10] : memref<1x10x10x144xf32, #tpu.memory_space<vmem>>, vector<1x6x8x144xf32>
    %19 = vector.shape_cast %18 : vector<1x6x8x144xf32> to vector<6x8x144xf32>
    %cst_11 = arith.constant 0.000000e+00 : f32
    %20 = vector.broadcast %cst_11 : f32 to vector<6x8x144xf32>
    %21 = arith.maximumf %19, %20 : vector<6x8x144xf32>
    %c0_12 = arith.constant 0 : index
    %22 = arith.index_cast %1 : i32 to index
    %c1_13 = arith.constant 1 : index
    %c0_14 = arith.constant 0 : index
    %23 = vector.load %arg3[%c0_12, %22, %c1_13, %c0_14] : memref<1x10x10x144xf32, #tpu.memory_space<vmem>>, vector<1x6x8x144xf32>
    %24 = vector.shape_cast %23 : vector<1x6x8x144xf32> to vector<6x8x144xf32>
    %cst_15 = arith.constant 0.000000e+00 : f32
    %25 = vector.broadcast %cst_15 : f32 to vector<6x8x144xf32>
    %26 = arith.maximumf %24, %25 : vector<6x8x144xf32>
    %c0_16 = arith.constant 0 : index
    %27 = arith.index_cast %1 : i32 to index
    %c0_17 = arith.constant 0 : index
    %c0_18 = arith.constant 0 : index
    %28 = vector.load %arg4[%c0_16, %27, %c0_17, %c0_18] : memref<1x10x10x144xf32, #tpu.memory_space<vmem>>, vector<1x5x8x144xf32>
    %29 = vector.shape_cast %28 : vector<1x5x8x144xf32> to vector<5x8x144xf32>
    %cst_19 = arith.constant 0.000000e+00 : f32
    %30 = vector.broadcast %cst_19 : f32 to vector<5x8x144xf32>
    %31 = arith.maximumf %29, %30 : vector<5x8x144xf32>
    %c0_20 = arith.constant 0 : index
    %32 = arith.index_cast %1 : i32 to index
    %c1_21 = arith.constant 1 : index
    %c0_22 = arith.constant 0 : index
    %33 = vector.load %arg4[%c0_20, %32, %c1_21, %c0_22] : memref<1x10x10x144xf32, #tpu.memory_space<vmem>>, vector<1x5x8x144xf32>
    %34 = vector.shape_cast %33 : vector<1x5x8x144xf32> to vector<5x8x144xf32>
    %cst_23 = arith.constant 0.000000e+00 : f32
    %35 = vector.broadcast %cst_23 : f32 to vector<5x8x144xf32>
    %36 = arith.maximumf %34, %35 : vector<5x8x144xf32>
    %c0_24 = arith.constant 0 : index
    %37 = arith.index_cast %1 : i32 to index
    %c2_25 = arith.constant 2 : index
    %c0_26 = arith.constant 0 : index
    %38 = vector.load %arg4[%c0_24, %37, %c2_25, %c0_26] : memref<1x10x10x144xf32, #tpu.memory_space<vmem>>, vector<1x5x8x144xf32>
    %39 = vector.shape_cast %38 : vector<1x5x8x144xf32> to vector<5x8x144xf32>
    %cst_27 = arith.constant 0.000000e+00 : f32
    %40 = vector.broadcast %cst_27 : f32 to vector<5x8x144xf32>
    %41 = arith.maximumf %39, %40 : vector<5x8x144xf32>
    %c0_28 = arith.constant 0 : index
    %42 = arith.index_cast %1 : i32 to index
    %c0_29 = arith.constant 0 : index
    %c0_30 = arith.constant 0 : index
    %43 = vector.load %arg5[%c0_28, %42, %c0_29, %c0_30] : memref<1x10x10x144xf32, #tpu.memory_space<vmem>>, vector<1x5x8x144xf32>
    %44 = vector.shape_cast %43 : vector<1x5x8x144xf32> to vector<5x8x144xf32>
    %cst_31 = arith.constant 0.000000e+00 : f32
    %45 = vector.broadcast %cst_31 : f32 to vector<5x8x144xf32>
    %46 = arith.maximumf %44, %45 : vector<5x8x144xf32>
    %c0_32 = arith.constant 0 : index
    %47 = arith.index_cast %1 : i32 to index
    %c1_33 = arith.constant 1 : index
    %c0_34 = arith.constant 0 : index
    %48 = vector.load %arg5[%c0_32, %47, %c1_33, %c0_34] : memref<1x10x10x144xf32, #tpu.memory_space<vmem>>, vector<1x5x8x144xf32>
    %49 = vector.shape_cast %48 : vector<1x5x8x144xf32> to vector<5x8x144xf32>
    %cst_35 = arith.constant 0.000000e+00 : f32
    %50 = vector.broadcast %cst_35 : f32 to vector<5x8x144xf32>
    %51 = arith.maximumf %49, %50 : vector<5x8x144xf32>
    %c0_36 = arith.constant 0 : index
    %c0_37 = arith.constant 0 : index
    %52 = vector.load %arg6[%c0_36, %c0_37] : memref<25x144xf32, #tpu.memory_space<vmem>>, vector<25x144xf32>
    %cst_38 = arith.constant 0.000000e+00 : f32
    %53 = vector.broadcast %cst_38 : f32 to vector<4x8x144xf32>
    %54 = vector.extract_strided_slice %6 {offsets = [0, 0, 0], sizes = [4, 8, 144], strides = [1, 1, 1]} : vector<6x8x144xf32> to vector<4x8x144xf32>
    %55 = vector.extract_strided_slice %52 {offsets = [0, 0], sizes = [1, 144], strides = [1, 1]} : vector<25x144xf32> to vector<1x144xf32>
    %56 = vector.shape_cast %55 : vector<1x144xf32> to vector<144xf32>
    %57 = vector.shape_cast %56 : vector<144xf32> to vector<1x1x144xf32>
    %58 = vector.broadcast %57 : vector<1x1x144xf32> to vector<4x8x144xf32>
    %59 = arith.mulf %54, %58 : vector<4x8x144xf32>
    %60 = arith.addf %53, %59 : vector<4x8x144xf32>
    %61 = vector.extract_strided_slice %21 {offsets = [0, 0, 0], sizes = [4, 8, 144], strides = [1, 1, 1]} : vector<6x8x144xf32> to vector<4x8x144xf32>
    %62 = vector.extract_strided_slice %52 {offsets = [1, 0], sizes = [1, 144], strides = [1, 1]} : vector<25x144xf32> to vector<1x144xf32>
    %63 = vector.shape_cast %62 : vector<1x144xf32> to vector<144xf32>
    %64 = vector.shape_cast %63 : vector<144xf32> to vector<1x1x144xf32>
    %65 = vector.broadcast %64 : vector<1x1x144xf32> to vector<4x8x144xf32>
    %66 = arith.mulf %61, %65 : vector<4x8x144xf32>
    %67 = arith.addf %60, %66 : vector<4x8x144xf32>
    %68 = vector.extract_strided_slice %11 {offsets = [0, 0, 0], sizes = [4, 8, 144], strides = [1, 1, 1]} : vector<6x8x144xf32> to vector<4x8x144xf32>
    %69 = vector.extract_strided_slice %52 {offsets = [2, 0], sizes = [1, 144], strides = [1, 1]} : vector<25x144xf32> to vector<1x144xf32>
    %70 = vector.shape_cast %69 : vector<1x144xf32> to vector<144xf32>
    %71 = vector.shape_cast %70 : vector<144xf32> to vector<1x1x144xf32>
    %72 = vector.broadcast %71 : vector<1x1x144xf32> to vector<4x8x144xf32>
    %73 = arith.mulf %68, %72 : vector<4x8x144xf32>
    %74 = arith.addf %67, %73 : vector<4x8x144xf32>
    %75 = vector.extract_strided_slice %26 {offsets = [0, 0, 0], sizes = [4, 8, 144], strides = [1, 1, 1]} : vector<6x8x144xf32> to vector<4x8x144xf32>
    %76 = vector.extract_strided_slice %52 {offsets = [3, 0], sizes = [1, 144], strides = [1, 1]} : vector<25x144xf32> to vector<1x144xf32>
    %77 = vector.shape_cast %76 : vector<1x144xf32> to vector<144xf32>
    %78 = vector.shape_cast %77 : vector<144xf32> to vector<1x1x144xf32>
    %79 = vector.broadcast %78 : vector<1x1x144xf32> to vector<4x8x144xf32>
    %80 = arith.mulf %75, %79 : vector<4x8x144xf32>
    %81 = arith.addf %74, %80 : vector<4x8x144xf32>
    %82 = vector.extract_strided_slice %16 {offsets = [0, 0, 0], sizes = [4, 8, 144], strides = [1, 1, 1]} : vector<6x8x144xf32> to vector<4x8x144xf32>
    %83 = vector.extract_strided_slice %52 {offsets = [4, 0], sizes = [1, 144], strides = [1, 1]} : vector<25x144xf32> to vector<1x144xf32>
    %84 = vector.shape_cast %83 : vector<1x144xf32> to vector<144xf32>
    %85 = vector.shape_cast %84 : vector<144xf32> to vector<1x1x144xf32>
    %86 = vector.broadcast %85 : vector<1x1x144xf32> to vector<4x8x144xf32>
    %87 = arith.mulf %82, %86 : vector<4x8x144xf32>
    %88 = arith.addf %81, %87 : vector<4x8x144xf32>
    %89 = vector.extract_strided_slice %31 {offsets = [0, 0, 0], sizes = [4, 8, 144], strides = [1, 1, 1]} : vector<5x8x144xf32> to vector<4x8x144xf32>
    %90 = vector.extract_strided_slice %52 {offsets = [5, 0], sizes = [1, 144], strides = [1, 1]} : vector<25x144xf32> to vector<1x144xf32>
    %91 = vector.shape_cast %90 : vector<1x144xf32> to vector<144xf32>
    %92 = vector.shape_cast %91 : vector<144xf32> to vector<1x1x144xf32>
    %93 = vector.broadcast %92 : vector<1x1x144xf32> to vector<4x8x144xf32>
    %94 = arith.mulf %89, %93 : vector<4x8x144xf32>
    %95 = arith.addf %88, %94 : vector<4x8x144xf32>
    %96 = vector.extract_strided_slice %46 {offsets = [0, 0, 0], sizes = [4, 8, 144], strides = [1, 1, 1]} : vector<5x8x144xf32> to vector<4x8x144xf32>
    %97 = vector.extract_strided_slice %52 {offsets = [6, 0], sizes = [1, 144], strides = [1, 1]} : vector<25x144xf32> to vector<1x144xf32>
    %98 = vector.shape_cast %97 : vector<1x144xf32> to vector<144xf32>
    %99 = vector.shape_cast %98 : vector<144xf32> to vector<1x1x144xf32>
    %100 = vector.broadcast %99 : vector<1x1x144xf32> to vector<4x8x144xf32>
    %101 = arith.mulf %96, %100 : vector<4x8x144xf32>
    %102 = arith.addf %95, %101 : vector<4x8x144xf32>
    %103 = vector.extract_strided_slice %36 {offsets = [0, 0, 0], sizes = [4, 8, 144], strides = [1, 1, 1]} : vector<5x8x144xf32> to vector<4x8x144xf32>
    %104 = vector.extract_strided_slice %52 {offsets = [7, 0], sizes = [1, 144], strides = [1, 1]} : vector<25x144xf32> to vector<1x144xf32>
    %105 = vector.shape_cast %104 : vector<1x144xf32> to vector<144xf32>
    %106 = vector.shape_cast %105 : vector<144xf32> to vector<1x1x144xf32>
    %107 = vector.broadcast %106 : vector<1x1x144xf32> to vector<4x8x144xf32>
    %108 = arith.mulf %103, %107 : vector<4x8x144xf32>
    %109 = arith.addf %102, %108 : vector<4x8x144xf32>
    %110 = vector.extract_strided_slice %51 {offsets = [0, 0, 0], sizes = [4, 8, 144], strides = [1, 1, 1]} : vector<5x8x144xf32> to vector<4x8x144xf32>
    %111 = vector.extract_strided_slice %52 {offsets = [8, 0], sizes = [1, 144], strides = [1, 1]} : vector<25x144xf32> to vector<1x144xf32>
    %112 = vector.shape_cast %111 : vector<1x144xf32> to vector<144xf32>
    %113 = vector.shape_cast %112 : vector<144xf32> to vector<1x1x144xf32>
    %114 = vector.broadcast %113 : vector<1x1x144xf32> to vector<4x8x144xf32>
    %115 = arith.mulf %110, %114 : vector<4x8x144xf32>
    %116 = arith.addf %109, %115 : vector<4x8x144xf32>
    %117 = vector.extract_strided_slice %41 {offsets = [0, 0, 0], sizes = [4, 8, 144], strides = [1, 1, 1]} : vector<5x8x144xf32> to vector<4x8x144xf32>
    %118 = vector.extract_strided_slice %52 {offsets = [9, 0], sizes = [1, 144], strides = [1, 1]} : vector<25x144xf32> to vector<1x144xf32>
    %119 = vector.shape_cast %118 : vector<1x144xf32> to vector<144xf32>
    %120 = vector.shape_cast %119 : vector<144xf32> to vector<1x1x144xf32>
    %121 = vector.broadcast %120 : vector<1x1x144xf32> to vector<4x8x144xf32>
    %122 = arith.mulf %117, %121 : vector<4x8x144xf32>
    %123 = arith.addf %116, %122 : vector<4x8x144xf32>
    %124 = vector.extract_strided_slice %6 {offsets = [1, 0, 0], sizes = [4, 8, 144], strides = [1, 1, 1]} : vector<6x8x144xf32> to vector<4x8x144xf32>
    %125 = vector.extract_strided_slice %52 {offsets = [10, 0], sizes = [1, 144], strides = [1, 1]} : vector<25x144xf32> to vector<1x144xf32>
    %126 = vector.shape_cast %125 : vector<1x144xf32> to vector<144xf32>
    %127 = vector.shape_cast %126 : vector<144xf32> to vector<1x1x144xf32>
    %128 = vector.broadcast %127 : vector<1x1x144xf32> to vector<4x8x144xf32>
    %129 = arith.mulf %124, %128 : vector<4x8x144xf32>
    %130 = arith.addf %123, %129 : vector<4x8x144xf32>
    %131 = vector.extract_strided_slice %21 {offsets = [1, 0, 0], sizes = [4, 8, 144], strides = [1, 1, 1]} : vector<6x8x144xf32> to vector<4x8x144xf32>
    %132 = vector.extract_strided_slice %52 {offsets = [11, 0], sizes = [1, 144], strides = [1, 1]} : vector<25x144xf32> to vector<1x144xf32>
    %133 = vector.shape_cast %132 : vector<1x144xf32> to vector<144xf32>
    %134 = vector.shape_cast %133 : vector<144xf32> to vector<1x1x144xf32>
    %135 = vector.broadcast %134 : vector<1x1x144xf32> to vector<4x8x144xf32>
    %136 = arith.mulf %131, %135 : vector<4x8x144xf32>
    %137 = arith.addf %130, %136 : vector<4x8x144xf32>
    %138 = vector.extract_strided_slice %11 {offsets = [1, 0, 0], sizes = [4, 8, 144], strides = [1, 1, 1]} : vector<6x8x144xf32> to vector<4x8x144xf32>
    %139 = vector.extract_strided_slice %52 {offsets = [12, 0], sizes = [1, 144], strides = [1, 1]} : vector<25x144xf32> to vector<1x144xf32>
    %140 = vector.shape_cast %139 : vector<1x144xf32> to vector<144xf32>
    %141 = vector.shape_cast %140 : vector<144xf32> to vector<1x1x144xf32>
    %142 = vector.broadcast %141 : vector<1x1x144xf32> to vector<4x8x144xf32>
    %143 = arith.mulf %138, %142 : vector<4x8x144xf32>
    %144 = arith.addf %137, %143 : vector<4x8x144xf32>
    %145 = vector.extract_strided_slice %26 {offsets = [1, 0, 0], sizes = [4, 8, 144], strides = [1, 1, 1]} : vector<6x8x144xf32> to vector<4x8x144xf32>
    %146 = vector.extract_strided_slice %52 {offsets = [13, 0], sizes = [1, 144], strides = [1, 1]} : vector<25x144xf32> to vector<1x144xf32>
    %147 = vector.shape_cast %146 : vector<1x144xf32> to vector<144xf32>
    %148 = vector.shape_cast %147 : vector<144xf32> to vector<1x1x144xf32>
    %149 = vector.broadcast %148 : vector<1x1x144xf32> to vector<4x8x144xf32>
    %150 = arith.mulf %145, %149 : vector<4x8x144xf32>
    %151 = arith.addf %144, %150 : vector<4x8x144xf32>
    %152 = vector.extract_strided_slice %16 {offsets = [1, 0, 0], sizes = [4, 8, 144], strides = [1, 1, 1]} : vector<6x8x144xf32> to vector<4x8x144xf32>
    %153 = vector.extract_strided_slice %52 {offsets = [14, 0], sizes = [1, 144], strides = [1, 1]} : vector<25x144xf32> to vector<1x144xf32>
    %154 = vector.shape_cast %153 : vector<1x144xf32> to vector<144xf32>
    %155 = vector.shape_cast %154 : vector<144xf32> to vector<1x1x144xf32>
    %156 = vector.broadcast %155 : vector<1x1x144xf32> to vector<4x8x144xf32>
    %157 = arith.mulf %152, %156 : vector<4x8x144xf32>
    %158 = arith.addf %151, %157 : vector<4x8x144xf32>
    %159 = vector.extract_strided_slice %31 {offsets = [1, 0, 0], sizes = [4, 8, 144], strides = [1, 1, 1]} : vector<5x8x144xf32> to vector<4x8x144xf32>
    %160 = vector.extract_strided_slice %52 {offsets = [15, 0], sizes = [1, 144], strides = [1, 1]} : vector<25x144xf32> to vector<1x144xf32>
    %161 = vector.shape_cast %160 : vector<1x144xf32> to vector<144xf32>
    %162 = vector.shape_cast %161 : vector<144xf32> to vector<1x1x144xf32>
    %163 = vector.broadcast %162 : vector<1x1x144xf32> to vector<4x8x144xf32>
    %164 = arith.mulf %159, %163 : vector<4x8x144xf32>
    %165 = arith.addf %158, %164 : vector<4x8x144xf32>
    %166 = vector.extract_strided_slice %46 {offsets = [1, 0, 0], sizes = [4, 8, 144], strides = [1, 1, 1]} : vector<5x8x144xf32> to vector<4x8x144xf32>
    %167 = vector.extract_strided_slice %52 {offsets = [16, 0], sizes = [1, 144], strides = [1, 1]} : vector<25x144xf32> to vector<1x144xf32>
    %168 = vector.shape_cast %167 : vector<1x144xf32> to vector<144xf32>
    %169 = vector.shape_cast %168 : vector<144xf32> to vector<1x1x144xf32>
    %170 = vector.broadcast %169 : vector<1x1x144xf32> to vector<4x8x144xf32>
    %171 = arith.mulf %166, %170 : vector<4x8x144xf32>
    %172 = arith.addf %165, %171 : vector<4x8x144xf32>
    %173 = vector.extract_strided_slice %36 {offsets = [1, 0, 0], sizes = [4, 8, 144], strides = [1, 1, 1]} : vector<5x8x144xf32> to vector<4x8x144xf32>
    %174 = vector.extract_strided_slice %52 {offsets = [17, 0], sizes = [1, 144], strides = [1, 1]} : vector<25x144xf32> to vector<1x144xf32>
    %175 = vector.shape_cast %174 : vector<1x144xf32> to vector<144xf32>
    %176 = vector.shape_cast %175 : vector<144xf32> to vector<1x1x144xf32>
    %177 = vector.broadcast %176 : vector<1x1x144xf32> to vector<4x8x144xf32>
    %178 = arith.mulf %173, %177 : vector<4x8x144xf32>
    %179 = arith.addf %172, %178 : vector<4x8x144xf32>
    %180 = vector.extract_strided_slice %51 {offsets = [1, 0, 0], sizes = [4, 8, 144], strides = [1, 1, 1]} : vector<5x8x144xf32> to vector<4x8x144xf32>
    %181 = vector.extract_strided_slice %52 {offsets = [18, 0], sizes = [1, 144], strides = [1, 1]} : vector<25x144xf32> to vector<1x144xf32>
    %182 = vector.shape_cast %181 : vector<1x144xf32> to vector<144xf32>
    %183 = vector.shape_cast %182 : vector<144xf32> to vector<1x1x144xf32>
    %184 = vector.broadcast %183 : vector<1x1x144xf32> to vector<4x8x144xf32>
    %185 = arith.mulf %180, %184 : vector<4x8x144xf32>
    %186 = arith.addf %179, %185 : vector<4x8x144xf32>
    %187 = vector.extract_strided_slice %41 {offsets = [1, 0, 0], sizes = [4, 8, 144], strides = [1, 1, 1]} : vector<5x8x144xf32> to vector<4x8x144xf32>
    %188 = vector.extract_strided_slice %52 {offsets = [19, 0], sizes = [1, 144], strides = [1, 1]} : vector<25x144xf32> to vector<1x144xf32>
    %189 = vector.shape_cast %188 : vector<1x144xf32> to vector<144xf32>
    %190 = vector.shape_cast %189 : vector<144xf32> to vector<1x1x144xf32>
    %191 = vector.broadcast %190 : vector<1x1x144xf32> to vector<4x8x144xf32>
    %192 = arith.mulf %187, %191 : vector<4x8x144xf32>
    %193 = arith.addf %186, %192 : vector<4x8x144xf32>
    %194 = vector.extract_strided_slice %6 {offsets = [2, 0, 0], sizes = [4, 8, 144], strides = [1, 1, 1]} : vector<6x8x144xf32> to vector<4x8x144xf32>
    %195 = vector.extract_strided_slice %52 {offsets = [20, 0], sizes = [1, 144], strides = [1, 1]} : vector<25x144xf32> to vector<1x144xf32>
    %196 = vector.shape_cast %195 : vector<1x144xf32> to vector<144xf32>
    %197 = vector.shape_cast %196 : vector<144xf32> to vector<1x1x144xf32>
    %198 = vector.broadcast %197 : vector<1x1x144xf32> to vector<4x8x144xf32>
    %199 = arith.mulf %194, %198 : vector<4x8x144xf32>
    %200 = arith.addf %193, %199 : vector<4x8x144xf32>
    %201 = vector.extract_strided_slice %21 {offsets = [2, 0, 0], sizes = [4, 8, 144], strides = [1, 1, 1]} : vector<6x8x144xf32> to vector<4x8x144xf32>
    %202 = vector.extract_strided_slice %52 {offsets = [21, 0], sizes = [1, 144], strides = [1, 1]} : vector<25x144xf32> to vector<1x144xf32>
    %203 = vector.shape_cast %202 : vector<1x144xf32> to vector<144xf32>
    %204 = vector.shape_cast %203 : vector<144xf32> to vector<1x1x144xf32>
    %205 = vector.broadcast %204 : vector<1x1x144xf32> to vector<4x8x144xf32>
    %206 = arith.mulf %201, %205 : vector<4x8x144xf32>
    %207 = arith.addf %200, %206 : vector<4x8x144xf32>
    %208 = vector.extract_strided_slice %11 {offsets = [2, 0, 0], sizes = [4, 8, 144], strides = [1, 1, 1]} : vector<6x8x144xf32> to vector<4x8x144xf32>
    %209 = vector.extract_strided_slice %52 {offsets = [22, 0], sizes = [1, 144], strides = [1, 1]} : vector<25x144xf32> to vector<1x144xf32>
    %210 = vector.shape_cast %209 : vector<1x144xf32> to vector<144xf32>
    %211 = vector.shape_cast %210 : vector<144xf32> to vector<1x1x144xf32>
    %212 = vector.broadcast %211 : vector<1x1x144xf32> to vector<4x8x144xf32>
    %213 = arith.mulf %208, %212 : vector<4x8x144xf32>
    %214 = arith.addf %207, %213 : vector<4x8x144xf32>
    %215 = vector.extract_strided_slice %26 {offsets = [2, 0, 0], sizes = [4, 8, 144], strides = [1, 1, 1]} : vector<6x8x144xf32> to vector<4x8x144xf32>
    %216 = vector.extract_strided_slice %52 {offsets = [23, 0], sizes = [1, 144], strides = [1, 1]} : vector<25x144xf32> to vector<1x144xf32>
    %217 = vector.shape_cast %216 : vector<1x144xf32> to vector<144xf32>
    %218 = vector.shape_cast %217 : vector<144xf32> to vector<1x1x144xf32>
    %219 = vector.broadcast %218 : vector<1x1x144xf32> to vector<4x8x144xf32>
    %220 = arith.mulf %215, %219 : vector<4x8x144xf32>
    %221 = arith.addf %214, %220 : vector<4x8x144xf32>
    %222 = vector.extract_strided_slice %16 {offsets = [2, 0, 0], sizes = [4, 8, 144], strides = [1, 1, 1]} : vector<6x8x144xf32> to vector<4x8x144xf32>
    %223 = vector.extract_strided_slice %52 {offsets = [24, 0], sizes = [1, 144], strides = [1, 1]} : vector<25x144xf32> to vector<1x144xf32>
    %224 = vector.shape_cast %223 : vector<1x144xf32> to vector<144xf32>
    %225 = vector.shape_cast %224 : vector<144xf32> to vector<1x1x144xf32>
    %226 = vector.broadcast %225 : vector<1x1x144xf32> to vector<4x8x144xf32>
    %227 = arith.mulf %222, %226 : vector<4x8x144xf32>
    %228 = arith.addf %221, %227 : vector<4x8x144xf32>
    %c0_39 = arith.constant 0 : index
    %c0_40 = arith.constant 0 : index
    %c0_41 = arith.constant 0 : index
    %c0_42 = arith.constant 0 : index
    %229 = vector.load %arg7[%c0_39, %c0_40, %c0_41, %c0_42] : memref<1x4x8x144xf32, #tpu.memory_space<vmem>>, vector<1x4x8x144xf32>
    %230 = vector.shape_cast %229 : vector<1x4x8x144xf32> to vector<4x8x144xf32>
    %231 = vector.shape_cast %228 : vector<4x8x144xf32> to vector<1x4x8x144xf32>
    tpu.vector_store %arg7[%c0_39, %c0_40, %c0_41, %c0_42], %231 {strides = array<i32>} : memref<1x4x8x144xf32, #tpu.memory_space<vmem>>, vector<1x4x8x144xf32>,
    %cst_43 = arith.constant dense<0.000000e+00> : vector<144xf32>
    %232 = vector.multi_reduction <add>, %228, %cst_43 [0, 1] : vector<4x8x144xf32> to vector<144xf32>
    %233 = vector.shape_cast %232 : vector<144xf32> to vector<1x1x144xf32>
    %234 = vector.shape_cast %233 : vector<1x1x144xf32> to vector<1x144xf32>
    %235 = arith.mulf %228, %228 : vector<4x8x144xf32>
    %cst_44 = arith.constant dense<0.000000e+00> : vector<144xf32>
    %236 = vector.multi_reduction <add>, %235, %cst_44 [0, 1] : vector<4x8x144xf32> to vector<144xf32>
    %237 = vector.shape_cast %236 : vector<144xf32> to vector<1x1x144xf32>
    %238 = vector.shape_cast %237 : vector<1x1x144xf32> to vector<1x144xf32>
    %c0_45 = arith.constant 0 : index
    %c0_46 = arith.constant 0 : index
    %c0_47 = arith.constant 0 : index
    %c0_48 = arith.constant 0 : index
    %239 = vector.load %arg8[%c0_45, %c0_46, %c0_47, %c0_48] : memref<1x1x2x144xf32, #tpu.memory_space<vmem>>, vector<1x1x1x144xf32>
    %240 = vector.shape_cast %239 : vector<1x1x1x144xf32> to vector<1x144xf32>
    %241 = vector.shape_cast %234 : vector<1x144xf32> to vector<1x1x1x144xf32>
    tpu.vector_store %arg8[%c0_45, %c0_46, %c0_47, %c0_48], %241 {strides = array<i32>} : memref<1x1x2x144xf32, #tpu.memory_space<vmem>>, vector<1x1x1x144xf32>,
    %c0_49 = arith.constant 0 : index
    %c0_50 = arith.constant 0 : index
    %c1_51 = arith.constant 1 : index
    %c0_52 = arith.constant 0 : index
    %242 = vector.load %arg8[%c0_49, %c0_50, %c1_51, %c0_52] : memref<1x1x2x144xf32, #tpu.memory_space<vmem>>, vector<1x1x1x144xf32>
    %243 = vector.shape_cast %242 : vector<1x1x1x144xf32> to vector<1x144xf32>
    %244 = vector.shape_cast %238 : vector<1x144xf32> to vector<1x1x1x144xf32>
    tpu.vector_store %arg8[%c0_49, %c0_50, %c1_51, %c0_52], %244 {strides = array<i32>} : memref<1x1x2x144xf32, #tpu.memory_space<vmem>>, vector<1x1x1x144xf32>,
    return
  }
  func.func @transform_0(%arg0: i32, %arg1: i32) -> (i32, i32, i32, i32) {
    %c0_i32 = arith.constant 0 : i32
    %c0_i32_0 = arith.constant 0 : i32
    %c0_i32_1 = arith.constant 0 : i32
    %c0_i32_2 = arith.constant 0 : i32
    return %arg0, %c0_i32, %c0_i32_0, %c0_i32_1 : i32, i32, i32, i32
  }
  func.func @transform_1(%arg0: i32, %arg1: i32) -> (i32, i32, i32, i32) {
    %c0_i32 = arith.constant 0 : i32
    %c0_i32_0 = arith.constant 0 : i32
    %c0_i32_1 = arith.constant 0 : i32
    %c0_i32_2 = arith.constant 0 : i32
    return %arg0, %c0_i32, %c0_i32_0, %c0_i32_1 : i32, i32, i32, i32
  }
  func.func @transform_2(%arg0: i32, %arg1: i32) -> (i32, i32, i32, i32) {
    %c0_i32 = arith.constant 0 : i32
    %c0_i32_0 = arith.constant 0 : i32
    %c0_i32_1 = arith.constant 0 : i32
    %c0_i32_2 = arith.constant 0 : i32
    return %arg0, %c0_i32, %c0_i32_0, %c0_i32_1 : i32, i32, i32, i32
  }
  func.func @transform_3(%arg0: i32, %arg1: i32) -> (i32, i32, i32, i32) {
    %c0_i32 = arith.constant 0 : i32
    %c0_i32_0 = arith.constant 0 : i32
    %c0_i32_1 = arith.constant 0 : i32
    %c0_i32_2 = arith.constant 0 : i32
    return %arg0, %c0_i32, %c0_i32_0, %c0_i32_1 : i32, i32, i32, i32
  }
  func.func @transform_4(%arg0: i32, %arg1: i32) -> (i32, i32) {
    %c0_i32 = arith.constant 0 : i32
    %c0_i32_0 = arith.constant 0 : i32
    %c0_i32_1 = arith.constant 0 : i32
    return %c0_i32, %c0_i32_0 : i32, i32
  }
  func.func @transform_5(%arg0: i32, %arg1: i32) -> (i32, i32, i32, i32) {
    %c0_i32 = arith.constant 0 : i32
    %c0_i32_0 = arith.constant 0 : i32
    %c0_i32_1 = arith.constant 0 : i32
    return %arg0, %arg1, %c0_i32, %c0_i32_0 : i32, i32, i32, i32
  }
  func.func @transform_6(%arg0: i32, %arg1: i32) -> (i32, i32, i32, i32) {
    %c0_i32 = arith.constant 0 : i32
    %c0_i32_0 = arith.constant 0 : i32
    %c0_i32_1 = arith.constant 0 : i32
    return %arg0, %arg1, %c0_i32, %c0_i32_0 : i32, i32, i32, i32
  }
}

</mosaic_0001>

<llo_original>
// kernel: tpu_custom_call.1
$region0: #{tpu_custom_call.1}
  #allocation0 [shape = 'u32[]', space=smem, size = 0x4, offset = 0x4, fixed_abs, tag = 'smem constant byte address 0x4 - core index']
  #allocation1 [shape = 'u32[144,128]{1,0:T(1,128)}', space=vmem, size = 0x12000, scoped, tag = 'internal scratch']
  %s0 = inlined_call_operand.vmem [shape: f32[2,10,10,144], index: 0, kind: input, shape index: {}]
  %s1 = inlined_call_operand.vmem [shape: f32[2,10,10,144], index: 1, kind: input, shape index: {}]
  %s2 = inlined_call_operand.vmem [shape: f32[2,10,10,144], index: 2, kind: input, shape index: {}]
  %s3 = inlined_call_operand.vmem [shape: f32[2,10,10,144], index: 3, kind: input, shape index: {}]
  %s4 = inlined_call_operand.vmem [shape: f32[25,144], index: 4, kind: input, shape index: {}]
  %s5 = inlined_call_operand.hbm [shape: f32[2,8,8,144], index: 5, kind: output, shape index: {0}]
  %s6 = inlined_call_operand.hbm [shape: f32[2,2,2,144], index: 6, kind: output, shape index: {1}]
  %7 = xla_tuple %s5, %s6
  %s8 = sld [smem:[#allocation0]]
  $region61: #{tpu_custom_call.1} parent=0
    _
  %s10 = ssub.s32 1, %s8
  %s11 = scalar_select 0, %s10, %s8
  $region1: #{tpu_custom_call.1} parent=0
    #allocation2 [shape = 'u8[65536]{0}', space=vmem, size = 0x10000, scoped, tag = 'output window, operand 0']
    #allocation3 [shape = 's32[2]{0}', space=sflag, size = 0x8, scoped, tag = 'scoped memory for tpu_custom_call.1']
    #allocation4 [shape = 'u8[4096]{0}', space=vmem, size = 0x1000, scoped, tag = 'output window, operand 1']
    #allocation5 [shape = 's32[2]{0}', space=sflag, size = 0x8, scoped, tag = 'scoped memory for tpu_custom_call.1']
    %12 = vsyncpa [#allocation3], 0
    %s13 = scalar_lea.sflag [#allocation3], 1
    %14 = vsyncpa %s13, 0
    %15 = vsyncpa [#allocation5], 0
    %s16 = scalar_lea.sflag [#allocation5], 1
    %17 = vsyncpa %s16, 0
    loop: start=0, step=1, limit=6
    $region2: #{tpu_custom_call.1} parent=1 // loop_pre_header
      _
    $region3: #{tpu_custom_call.1} parent=1 // loop_header
      %s19 = sphi 0, %s23
      %p20 = scmp.ge.s32.totalorder %s19, 6
      %s26 = sphi 0, %s38
      %s27 = sphi 0, %s34
      %s28 = sphi 0, %s26
      %s29 = sphi 0, %s27
      %s30 = sphi 0, %s28
      %s31 = sphi 0, %s29
      %s41 = sphi 0, %s43
      %s44 = sphi 0, %s41
      %s45 = sphi 0, %s44
      %s61 = sphi 0, %s45
      %s67 = sphi 0, %s69
      %s70 = sphi 0, %s67
      %s71 = sphi 0, %s70
      %s87 = sphi 0, %s71
      %s93 = sphi 0, %s95
      %s96 = sphi 0, %s93
      %s97 = sphi 0, %s96
      %s113 = sphi 0, %s97
      %s119 = sphi 0, %s121
      %s122 = sphi 0, %s119
      %s123 = sphi 0, %s122
      %s139 = sphi 0, %s123
      %s143 = sphi 0, %s143
      %s145 = sphi 0, %s143
      %s146 = sphi 0, %s145
      %s160 = sphi 0, %s146
      %s168 = sphi 0, %s170
      %s171 = sphi 0, %s168
      %s172 = sphi 0, %s171
      %s188 = sphi 0, %s172
      %s196 = sphi 0, %s198
      %s199 = sphi 0, %s196
      %s200 = sphi 0, %s199
      %s216 = sphi 0, %s200
    $region4: #{tpu_custom_call.1} parent=1 // loop_header_branch
      %22 = sbr.rel (%p20) target = $region8
    $region5: #{tpu_custom_call.1} parent=1 // loop_body
      %s24 = ssub.s32 %s19, 1
      %s25 = ssub.s32 %s19, 2
      %s32 = sadd.s32 1, %s27
      %p33 = scmp.ge.s32.totalorder %s32, 2
      %s34 = scalar_select %p33, 0, %s32
      %s35 = sadd.s32 1, %s26
      %s36 = scalar_select %p33, %s35, %s26
      %p37 = scmp.ge.s32.totalorder %s36, 2
      %s38 = scalar_select %p37, 0, %s36
      %s39 = ssub.s32 %s26, %s38
      %p40 = scmp.eq.s32.totalorder %s39, 0
      %s42 = sadd.s32 %s41, 1
      %s43 = scalar_select %p40, %s41, %s42
      %p46 = pneg %p40
      %p47 = scmp.eq.s32.totalorder %s19, 3
      %p48 = por %p46, %p47
      %p49 = scmp.ne.s32.totalorder %s41, %s44
      %p50 = scmp.eq.s32.totalorder %s19, 0
      %p51 = por %p49, %p50
      %p52 = scmp.ne.s32.totalorder %s41, %s44
      %p53 = scmp.eq.s32.totalorder %s24, 3
      %p54 = por %p52, %p53
      %p55 = scmp.ne.s32.totalorder %s44, %s45
      %p56 = scmp.eq.s32.totalorder %s24, 0
      %p57 = por %p55, %p56
      %p58 = scmp.ne.s32.totalorder %s44, %s45
      %p59 = scmp.eq.s32.totalorder %s25, 3
      %p60 = por %p58, %p59
      %p62 = scmp.ne.s32.totalorder %s45, %s61
      %p63 = scmp.eq.s32.totalorder %s25, 0
      %p64 = por %p62, %p63
      %s65 = ssub.s32 %s26, %s38
      %p66 = scmp.eq.s32.totalorder %s65, 0
      %s68 = sadd.s32 %s67, 1
      %s69 = scalar_select %p66, %s67, %s68
      %p72 = pneg %p66
      %p73 = scmp.eq.s32.totalorder %s19, 3
      %p74 = por %p72, %p73
      %p75 = scmp.ne.s32.totalorder %s67, %s70
      %p76 = scmp.eq.s32.totalorder %s19, 0
      %p77 = por %p75, %p76
      %p78 = scmp.ne.s32.totalorder %s67, %s70
      %p79 = scmp.eq.s32.totalorder %s24, 3
      %p80 = por %p78, %p79
      %p81 = scmp.ne.s32.totalorder %s70, %s71
      %p82 = scmp.eq.s32.totalorder %s24, 0
      %p83 = por %p81, %p82
      %p84 = scmp.ne.s32.totalorder %s70, %s71
      %p85 = scmp.eq.s32.totalorder %s25, 3
      %p86 = por %p84, %p85
      %p88 = scmp.ne.s32.totalorder %s71, %s87
      %p89 = scmp.eq.s32.totalorder %s25, 0
      %p90 = por %p88, %p89
      %s91 = ssub.s32 %s26, %s38
      %p92 = scmp.eq.s32.totalorder %s91, 0
      %s94 = sadd.s32 %s93, 1
      %s95 = scalar_select %p92, %s93, %s94
      %p98 = pneg %p92
      %p99 = scmp.eq.s32.totalorder %s19, 3
      %p100 = por %p98, %p99
      %p101 = scmp.ne.s32.totalorder %s93, %s96
      %p102 = scmp.eq.s32.totalorder %s19, 0
      %p103 = por %p101, %p102
      %p104 = scmp.ne.s32.totalorder %s93, %s96
      %p105 = scmp.eq.s32.totalorder %s24, 3
      %p106 = por %p104, %p105
      %p107 = scmp.ne.s32.totalorder %s96, %s97
      %p108 = scmp.eq.s32.totalorder %s24, 0
      %p109 = por %p107, %p108
      %p110 = scmp.ne.s32.totalorder %s96, %s97
      %p111 = scmp.eq.s32.totalorder %s25, 3
      %p112 = por %p110, %p111
      %p114 = scmp.ne.s32.totalorder %s97, %s113
      %p115 = scmp.eq.s32.totalorder %s25, 0
      %p116 = por %p114, %p115
      %s117 = ssub.s32 %s26, %s38
      %p118 = scmp.eq.s32.totalorder %s117, 0
      %s120 = sadd.s32 %s119, 1
      %s121 = scalar_select %p118, %s119, %s120
      %p124 = pneg %p118
      %p125 = scmp.eq.s32.totalorder %s19, 3
      %p126 = por %p124, %p125
      %p127 = scmp.ne.s32.totalorder %s119, %s122
      %p128 = scmp.eq.s32.totalorder %s19, 0
      %p129 = por %p127, %p128
      %p130 = scmp.ne.s32.totalorder %s119, %s122
      %p131 = scmp.eq.s32.totalorder %s24, 3
      %p132 = por %p130, %p131
      %p133 = scmp.ne.s32.totalorder %s122, %s123
      %p134 = scmp.eq.s32.totalorder %s24, 0
      %p135 = por %p133, %p134
      %p136 = scmp.ne.s32.totalorder %s122, %s123
      %p137 = scmp.eq.s32.totalorder %s25, 3
      %p138 = por %p136, %p137
      %p140 = scmp.ne.s32.totalorder %s123, %s139
      %p141 = scmp.eq.s32.totalorder %s25, 0
      %p142 = por %p140, %p141
      %s144 = sadd.s32 %s143, 1
      %p147 = scmp.eq.s32.totalorder %s19, 3
      %p148 = scmp.ne.s32.totalorder %s143, %s145
      %p149 = scmp.eq.s32.totalorder %s19, 0
      %p150 = por %p148, %p149
      %p151 = scmp.ne.s32.totalorder %s143, %s145
      %p152 = scmp.eq.s32.totalorder %s24, 3
      %p153 = por %p151, %p152
      %p154 = scmp.ne.s32.totalorder %s145, %s146
      %p155 = scmp.eq.s32.totalorder %s24, 0
      %p156 = por %p154, %p155
      %p157 = scmp.ne.s32.totalorder %s145, %s146
      %p158 = scmp.eq.s32.totalorder %s25, 3
      %p159 = por %p157, %p158
      %p161 = scmp.ne.s32.totalorder %s146, %s160
      %p162 = scmp.eq.s32.totalorder %s25, 0
      %p163 = por %p161, %p162
      %s164 = ssub.s32 %s26, %s38
      %s165 = ssub.s32 %s27, %s34
      %s166 = sor.u32 %s164, %s165
      %p167 = scmp.eq.s32.totalorder %s166, 0
      %s169 = sadd.s32 %s168, 1
      %s170 = scalar_select %p167, %s168, %s169
      %p173 = pneg %p167
      %p174 = scmp.eq.s32.totalorder %s19, 3
      %p175 = por %p173, %p174
      %p176 = scmp.ne.s32.totalorder %s168, %s171
      %p177 = scmp.eq.s32.totalorder %s19, 0
      %p178 = por %p176, %p177
      %p179 = scmp.ne.s32.totalorder %s168, %s171
      %p180 = scmp.eq.s32.totalorder %s24, 3
      %p181 = por %p179, %p180
      %p182 = scmp.ne.s32.totalorder %s171, %s172
      %p183 = scmp.eq.s32.totalorder %s24, 0
      %p184 = por %p182, %p183
      %p185 = scmp.ne.s32.totalorder %s171, %s172
      %p186 = scmp.eq.s32.totalorder %s25, 3
      %p187 = por %p185, %p186
      %p189 = scmp.ne.s32.totalorder %s172, %s188
      %p190 = scmp.eq.s32.totalorder %s25, 0
      %p191 = por %p189, %p190
      %s192 = ssub.s32 %s26, %s38
      %s193 = ssub.s32 %s27, %s34
      %s194 = sor.u32 %s192, %s193
      %p195 = scmp.eq.s32.totalorder %s194, 0
      %s197 = sadd.s32 %s196, 1
      %s198 = scalar_select %p195, %s196, %s197
      %p201 = pneg %p195
      %p202 = scmp.eq.s32.totalorder %s19, 3
      %p203 = por %p201, %p202
      %p204 = scmp.ne.s32.totalorder %s196, %s199
      %p205 = scmp.eq.s32.totalorder %s19, 0
      %p206 = por %p204, %p205
      %p207 = scmp.ne.s32.totalorder %s196, %s199
      %p208 = scmp.eq.s32.totalorder %s24, 3
      %p209 = por %p207, %p208
      %p210 = scmp.ne.s32.totalorder %s199, %s200
      %p211 = scmp.eq.s32.totalorder %s24, 0
      %p212 = por %p210, %p211
      %p213 = scmp.ne.s32.totalorder %s199, %s200
      %p214 = scmp.eq.s32.totalorder %s25, 3
      %p215 = por %p213, %p214
      %p217 = scmp.ne.s32.totalorder %s200, %s216
      %p218 = scmp.eq.s32.totalorder %s25, 0
      %p219 = por %p217, %p218
      %p220 = scmp.le.s32.totalorder 1, %s19
      %p221 = scmp.lt.s32.totalorder %s19, 5
      %p222 = pnand %p220, %p221
      %p223 = pneg %p222
      // Predicated region
      $region9: #{tpu_custom_call.1} parent=5 // pred_check
        _
      $region10: #{tpu_custom_call.1} parent=5 // pred_check_branch
        %225 = sbr.rel (%p222) target = $region12
      $region11: #{tpu_custom_call.1} parent=5 // pred_region
        %s226 = ssub.s32 %s19, 1
        // Predicated region
        $region13: #{tpu_custom_call.1} parent=11 // pred_check
          %p227 = pneg %p156
        $region14: #{tpu_custom_call.1} parent=11 // pred_check_branch
          %229 = sbr.rel (%p227) target = $region16
        $region15: #{tpu_custom_call.1} parent=11 // pred_region
          _
        $region16: #{tpu_custom_call.1} parent=11 // pred_fallthru
          _
      $region12: #{tpu_custom_call.1} parent=5 // pred_fallthru
        _
      %p230 = scmp.lt.s32.totalorder %s19, 4
      // Predicated region
      $region17: #{tpu_custom_call.1} parent=5 // pred_check
        %p231 = pneg %p230
      $region18: #{tpu_custom_call.1} parent=5 // pred_check_branch
        %233 = sbr.rel (%p231) target = $region20
      $region19: #{tpu_custom_call.1} parent=5 // pred_region
        // Predicated region
        $region21: #{tpu_custom_call.1} parent=19 // pred_check
          %p234 = pneg %p51
        $region22: #{tpu_custom_call.1} parent=19 // pred_check_branch
          %236 = sbr.rel (%p234) target = $region24
        $region23: #{tpu_custom_call.1} parent=19 // pred_region
          %p237 = scmp.lt.s32.totalorder %s26, 1
          %s238 = scalar_select %p237, %s26, 1
          %s239 = smul.addr %s238, 40
          %s240 = smul.addr %s239, 8
          %s241 = scalar_lea.vmem %s0, %s240
        $region24: #{tpu_custom_call.1} parent=19 // pred_fallthru
          _
        // Predicated region
        $region25: #{tpu_custom_call.1} parent=19 // pred_check
          %p242 = pneg %p77
        $region26: #{tpu_custom_call.1} parent=19 // pred_check_branch
          %244 = sbr.rel (%p242) target = $region28
        $region27: #{tpu_custom_call.1} parent=19 // pred_region
          %p245 = scmp.lt.s32.totalorder %s26, 1
          %s246 = scalar_select %p245, %s26, 1
          %s247 = smul.addr %s246, 40
          %s248 = smul.addr %s247, 8
          %s249 = scalar_lea.vmem %s1, %s248
        $region28: #{tpu_custom_call.1} parent=19 // pred_fallthru
          _
        // Predicated region
        $region29: #{tpu_custom_call.1} parent=19 // pred_check
          %p250 = pneg %p103
        $region30: #{tpu_custom_call.1} parent=19 // pred_check_branch
          %252 = sbr.rel (%p250) target = $region32
        $region31: #{tpu_custom_call.1} parent=19 // pred_region
          %p253 = scmp.lt.s32.totalorder %s26, 1
          %s254 = scalar_select %p253, %s26, 1
          %s255 = smul.addr %s254, 40
          %s256 = smul.addr %s255, 8
          %s257 = scalar_lea.vmem %s2, %s256
        $region32: #{tpu_custom_call.1} parent=19 // pred_fallthru
          _
        // Predicated region
        $region33: #{tpu_custom_call.1} parent=19 // pred_check
          %p258 = pneg %p129
        $region34: #{tpu_custom_call.1} parent=19 // pred_check_branch
          %260 = sbr.rel (%p258) target = $region36
        $region35: #{tpu_custom_call.1} parent=19 // pred_region
          %p261 = scmp.lt.s32.totalorder %s26, 1
          %s262 = scalar_select %p261, %s26, 1
          %s263 = smul.addr %s262, 40
          %s264 = smul.addr %s263, 8
          %s265 = scalar_lea.vmem %s3, %s264
        $region36: #{tpu_custom_call.1} parent=19 // pred_fallthru
          _
      $region20: #{tpu_custom_call.1} parent=5 // pred_fallthru
        _
      %p266 = scmp.le.s32.totalorder 1, %s19
      %p267 = scmp.lt.s32.totalorder %s19, 5
      %p268 = pnand %p266, %p267
      %p269 = pneg %p268
      // Predicated region
      $region37: #{tpu_custom_call.1} parent=5 // pred_check
        _
      $region38: #{tpu_custom_call.1} parent=5 // pred_check_branch
        %271 = sbr.rel (%p268) target = $region40
      $region39: #{tpu_custom_call.1} parent=5 // pred_region
        %s272 = ssub.s32 %s19, 1
        %p273 = scmp.lt.s32.totalorder %s28, 1
        %s274 = scalar_select %p273, %s28, 1
        %s275 = smul.addr %s274, 40
        %s276 = smul.addr %s275, 8
        %s277 = scalar_lea.vmem %s0, %s276
        %p278 = pneg %p57
        %p279 = pneg %p54
        %p280 = scmp.lt.s32.totalorder %s28, 1
        %s281 = scalar_select %p280, %s28, 1
        %s282 = smul.addr %s281, 40
        %s283 = smul.addr %s282, 8
        %s284 = scalar_lea.vmem %s1, %s283
        %p285 = pneg %p83
        %p286 = pneg %p80
        %p287 = scmp.lt.s32.totalorder %s28, 1
        %s288 = scalar_select %p287, %s28, 1
        %s289 = smul.addr %s288, 40
        %s290 = smul.addr %s289, 8
        %s291 = scalar_lea.vmem %s2, %s290
        %p292 = pneg %p109
        %p293 = pneg %p106
        %p294 = scmp.lt.s32.totalorder %s28, 1
        %s295 = scalar_select %p294, %s28, 1
        %s296 = smul.addr %s295, 40
        %s297 = smul.addr %s296, 8
        %s298 = scalar_lea.vmem %s3, %s297
        %p299 = pneg %p135
        %p300 = pneg %p132
        %p301 = pneg %p156
        %p302 = pneg %p153
        %p303 = pneg %p184
        %p304 = pneg %p181
        %s305 = sand.u32 %s171, 1
        %s306 = scalar_lea.sflag [#allocation3], %s305
        %s307 = sand.u32 %s171, 1
        %s308 = smul.addr %s307, 64
        %s309 = scalar_lea.vmem [#allocation2], %s308
        %p310 = pneg %p212
        %p311 = pneg %p209
        %s312 = sand.u32 %s199, 1
        %s313 = scalar_lea.sflag [#allocation5], %s312
        %s314 = sand.u32 %s199, 1
        %s315 = smul.addr %s314, 4
        %s316 = scalar_lea.vmem [#allocation4], %s315
        %p317 = scmp.lt.s32.totalorder %s28, 1
        %s318 = scalar_select %p317, %s28, 1
        %s319 = smul.addr %s318, 40
        %s320 = smul.addr %s319, 8
        %s321 = scalar_lea.vmem %s0, %s320
        %p322 = scmp.lt.s32.totalorder %s28, 1
        %s323 = scalar_select %p322, %s28, 1
        %s324 = smul.addr %s323, 40
        %s325 = smul.addr %s324, 8
        %s326 = scalar_lea.vmem %s1, %s325
        %p327 = scmp.lt.s32.totalorder %s28, 1
        %s328 = scalar_select %p327, %s28, 1
        %s329 = smul.addr %s328, 40
        %s330 = smul.addr %s329, 8
        %s331 = scalar_lea.vmem %s2, %s330
        %p332 = scmp.lt.s32.totalorder %s28, 1
        %s333 = scalar_select %p332, %s28, 1
        %s334 = smul.addr %s333, 40
        %s335 = smul.addr %s334, 8
        %s336 = scalar_lea.vmem %s3, %s335
        %s337 = smul.u32 4, %s29
        %s338 = smul.u32 %s29, 4
        %s339 = smul.u32 %s338, 4
        %s340 = smul.addr %s339, 8
        %s341 = scalar_lea.vmem %s321, %s340
        %v342 = vld [vmem:[%s341] sm:$0xff]
        %v343 = vld [vmem:[%s341 + $0x8] sm:$0xff]
        %v344 = vld [vmem:[%s341 + $0x20] sm:$0xff]
        %v345 = vld [vmem:[%s341 + $0x28] sm:$0xff]
        %v346 = vld [vmem:[%s341 + $0x40] sm:$0xff]
        %v347 = vld [vmem:[%s341 + $0x48] sm:$0xff]
        %v348 = vld [vmem:[%s341 + $0x60] sm:$0xff]
        %v349 = vld [vmem:[%s341 + $0x68] sm:$0xff]
        %v350 = vld [vmem:[%s341 + $0x80] sm:$0xff]
        %v351 = vld [vmem:[%s341 + $0x88] sm:$0xff]
        %v352 = vld [vmem:[%s341 + $0xa0] sm:$0xff]
        %v353 = vld [vmem:[%s341 + $0xa8] sm:$0xff]
        %v354 = vmax.f32 %v342, 0.0
        %v355 = vmax.f32 %v343, 0.0
        %v356 = vmax.f32 %v344, 0.0
        %v357 = vmax.f32 %v345, 0.0
        %v358 = vmax.f32 %v346, 0.0
        %v359 = vmax.f32 %v347, 0.0
        %v360 = vmax.f32 %v348, 0.0
        %v361 = vmax.f32 %v349, 0.0
        %v362 = vmax.f32 %v350, 0.0
        %v363 = vmax.f32 %v351, 0.0
        %v364 = vmax.f32 %v352, 0.0
        %v365 = vmax.f32 %v353, 0.0
        %v366 = vld [vmem:[%s341] sm:$0xfe]
        %v367 = vld [vmem:[%s341 + $0x8] sm:$0xfe]
        %v368 = vld [vmem:[%s341 + $0x10] sm:$0x1]
        %v369 = vld [vmem:[%s341 + $0x18] sm:$0x1]
        %v370 = vld [vmem:[%s341 + $0x20] sm:$0xfe]
        %v371 = vld [vmem:[%s341 + $0x28] sm:$0xfe]
        %v372 = vld [vmem:[%s341 + $0x30] sm:$0x1]
        %v373 = vld [vmem:[%s341 + $0x38] sm:$0x1]
        %v374 = vld [vmem:[%s341 + $0x40] sm:$0xfe]
        %v375 = vld [vmem:[%s341 + $0x48] sm:$0xfe]
        %v376 = vld [vmem:[%s341 + $0x50] sm:$0x1]
        %v377 = vld [vmem:[%s341 + $0x58] sm:$0x1]
        %v378 = vld [vmem:[%s341 + $0x60] sm:$0xfe]
        %v379 = vld [vmem:[%s341 + $0x68] sm:$0xfe]
        %v380 = vld [vmem:[%s341 + $0x70] sm:$0x1]
        %v381 = vld [vmem:[%s341 + $0x78] sm:$0x1]
        %v382 = vld [vmem:[%s341 + $0x80] sm:$0xfe]
        %v383 = vld [vmem:[%s341 + $0x88] sm:$0xfe]
        %v384 = vld [vmem:[%s341 + $0x90] sm:$0x1]
        %v385 = vld [vmem:[%s341 + $0x98] sm:$0x1]
        %v386 = vld [vmem:[%s341 + $0xa0] sm:$0xfe]
        %v387 = vld [vmem:[%s341 + $0xa8] sm:$0xfe]
        %v388 = vld [vmem:[%s341 + $0xb0] sm:$0x1]
        %v389 = vld [vmem:[%s341 + $0xb8] sm:$0x1]
        %v390 = vmax.f32 %v366, 0.0
        %v391 = vmax.f32 %v367, 0.0
        %v392 = vmax.f32 %v368, 0.0
        %v393 = vmax.f32 %v369, 0.0
        %v394 = vmax.f32 %v370, 0.0
        %v395 = vmax.f32 %v371, 0.0
        %v396 = vmax.f32 %v372, 0.0
        %v397 = vmax.f32 %v373, 0.0
        %v398 = vmax.f32 %v374, 0.0
        %v399 = vmax.f32 %v375, 0.0
        %v400 = vmax.f32 %v376, 0.0
        %v401 = vmax.f32 %v377, 0.0
        %v402 = vmax.f32 %v378, 0.0
        %v403 = vmax.f32 %v379, 0.0
        %v404 = vmax.f32 %v380, 0.0
        %v405 = vmax.f32 %v381, 0.0
        %v406 = vmax.f32 %v382, 0.0
        %v407 = vmax.f32 %v383, 0.0
        %v408 = vmax.f32 %v384, 0.0
        %v409 = vmax.f32 %v385, 0.0
        %v410 = vmax.f32 %v386, 0.0
        %v411 = vmax.f32 %v387, 0.0
        %v412 = vmax.f32 %v388, 0.0
        %v413 = vmax.f32 %v389, 0.0
        %v414 = vld [vmem:[%s341] sm:$0xfc]
        %v415 = vld [vmem:[%s341 + $0x8] sm:$0xfc]
        %v416 = vld [vmem:[%s341 + $0x10] sm:$0x3]
        %v417 = vld [vmem:[%s341 + $0x18] sm:$0x3]
        %v418 = vld [vmem:[%s341 + $0x20] sm:$0xfc]
        %v419 = vld [vmem:[%s341 + $0x28] sm:$0xfc]
        %v420 = vld [vmem:[%s341 + $0x30] sm:$0x3]
        %v421 = vld [vmem:[%s341 + $0x38] sm:$0x3]
        %v422 = vld [vmem:[%s341 + $0x40] sm:$0xfc]
        %v423 = vld [vmem:[%s341 + $0x48] sm:$0xfc]
        %v424 = vld [vmem:[%s341 + $0x50] sm:$0x3]
        %v425 = vld [vmem:[%s341 + $0x58] sm:$0x3]
        %v426 = vld [vmem:[%s341 + $0x60] sm:$0xfc]
        %v427 = vld [vmem:[%s341 + $0x68] sm:$0xfc]
        %v428 = vld [vmem:[%s341 + $0x70] sm:$0x3]
        %v429 = vld [vmem:[%s341 + $0x78] sm:$0x3]
        %v430 = vld [vmem:[%s341 + $0x80] sm:$0xfc]
        %v431 = vld [vmem:[%s341 + $0x88] sm:$0xfc]
        %v432 = vld [vmem:[%s341 + $0x90] sm:$0x3]
        %v433 = vld [vmem:[%s341 + $0x98] sm:$0x3]
        %v434 = vld [vmem:[%s341 + $0xa0] sm:$0xfc]
        %v435 = vld [vmem:[%s341 + $0xa8] sm:$0xfc]
        %v436 = vld [vmem:[%s341 + $0xb0] sm:$0x3]
        %v437 = vld [vmem:[%s341 + $0xb8] sm:$0x3]
        %v438 = vmax.f32 %v414, 0.0
        %v439 = vmax.f32 %v415, 0.0
        %v440 = vmax.f32 %v416, 0.0
        %v441 = vmax.f32 %v417, 0.0
        %v442 = vmax.f32 %v418, 0.0
        %v443 = vmax.f32 %v419, 0.0
        %v444 = vmax.f32 %v420, 0.0
        %v445 = vmax.f32 %v421, 0.0
        %v446 = vmax.f32 %v422, 0.0
        %v447 = vmax.f32 %v423, 0.0
        %v448 = vmax.f32 %v424, 0.0
        %v449 = vmax.f32 %v425, 0.0
        %v450 = vmax.f32 %v426, 0.0
        %v451 = vmax.f32 %v427, 0.0
        %v452 = vmax.f32 %v428, 0.0
        %v453 = vmax.f32 %v429, 0.0
        %v454 = vmax.f32 %v430, 0.0
        %v455 = vmax.f32 %v431, 0.0
        %v456 = vmax.f32 %v432, 0.0
        %v457 = vmax.f32 %v433, 0.0
        %v458 = vmax.f32 %v434, 0.0
        %v459 = vmax.f32 %v435, 0.0
        %v460 = vmax.f32 %v436, 0.0
        %v461 = vmax.f32 %v437, 0.0
        %s462 = smul.addr %s339, 8
        %s463 = scalar_lea.vmem %s326, %s462
        %v464 = vld [vmem:[%s463] sm:$0xff]
        %v465 = vld [vmem:[%s463 + $0x8] sm:$0xff]
        %v466 = vld [vmem:[%s463 + $0x20] sm:$0xff]
        %v467 = vld [vmem:[%s463 + $0x28] sm:$0xff]
        %v468 = vld [vmem:[%s463 + $0x40] sm:$0xff]
        %v469 = vld [vmem:[%s463 + $0x48] sm:$0xff]
        %v470 = vld [vmem:[%s463 + $0x60] sm:$0xff]
        %v471 = vld [vmem:[%s463 + $0x68] sm:$0xff]
        %v472 = vld [vmem:[%s463 + $0x80] sm:$0xff]
        %v473 = vld [vmem:[%s463 + $0x88] sm:$0xff]
        %v474 = vld [vmem:[%s463 + $0xa0] sm:$0xff]
        %v475 = vld [vmem:[%s463 + $0xa8] sm:$0xff]
        %v476 = vmax.f32 %v464, 0.0
        %v477 = vmax.f32 %v465, 0.0
        %v478 = vmax.f32 %v466, 0.0
        %v479 = vmax.f32 %v467, 0.0
        %v480 = vmax.f32 %v468, 0.0
        %v481 = vmax.f32 %v469, 0.0
        %v482 = vmax.f32 %v470, 0.0
        %v483 = vmax.f32 %v471, 0.0
        %v484 = vmax.f32 %v472, 0.0
        %v485 = vmax.f32 %v473, 0.0
        %v486 = vmax.f32 %v474, 0.0
        %v487 = vmax.f32 %v475, 0.0
        %v488 = vld [vmem:[%s463] sm:$0xfe]
        %v489 = vld [vmem:[%s463 + $0x8] sm:$0xfe]
        %v490 = vld [vmem:[%s463 + $0x10] sm:$0x1]
        %v491 = vld [vmem:[%s463 + $0x18] sm:$0x1]
        %v492 = vld [vmem:[%s463 + $0x20] sm:$0xfe]
        %v493 = vld [vmem:[%s463 + $0x28] sm:$0xfe]
        %v494 = vld [vmem:[%s463 + $0x30] sm:$0x1]
        %v495 = vld [vmem:[%s463 + $0x38] sm:$0x1]
        %v496 = vld [vmem:[%s463 + $0x40] sm:$0xfe]
        %v497 = vld [vmem:[%s463 + $0x48] sm:$0xfe]
        %v498 = vld [vmem:[%s463 + $0x50] sm:$0x1]
        %v499 = vld [vmem:[%s463 + $0x58] sm:$0x1]
        %v500 = vld [vmem:[%s463 + $0x60] sm:$0xfe]
        %v501 = vld [vmem:[%s463 + $0x68] sm:$0xfe]
        %v502 = vld [vmem:[%s463 + $0x70] sm:$0x1]
        %v503 = vld [vmem:[%s463 + $0x78] sm:$0x1]
        %v504 = vld [vmem:[%s463 + $0x80] sm:$0xfe]
        %v505 = vld [vmem:[%s463 + $0x88] sm:$0xfe]
        %v506 = vld [vmem:[%s463 + $0x90] sm:$0x1]
        %v507 = vld [vmem:[%s463 + $0x98] sm:$0x1]
        %v508 = vld [vmem:[%s463 + $0xa0] sm:$0xfe]
        %v509 = vld [vmem:[%s463 + $0xa8] sm:$0xfe]
        %v510 = vld [vmem:[%s463 + $0xb0] sm:$0x1]
        %v511 = vld [vmem:[%s463 + $0xb8] sm:$0x1]
        %v512 = vmax.f32 %v488, 0.0
        %v513 = vmax.f32 %v489, 0.0
        %v514 = vmax.f32 %v490, 0.0
        %v515 = vmax.f32 %v491, 0.0
        %v516 = vmax.f32 %v492, 0.0
        %v517 = vmax.f32 %v493, 0.0
        %v518 = vmax.f32 %v494, 0.0
        %v519 = vmax.f32 %v495, 0.0
        %v520 = vmax.f32 %v496, 0.0
        %v521 = vmax.f32 %v497, 0.0
        %v522 = vmax.f32 %v498, 0.0
        %v523 = vmax.f32 %v499, 0.0
        %v524 = vmax.f32 %v500, 0.0
        %v525 = vmax.f32 %v501, 0.0
        %v526 = vmax.f32 %v502, 0.0
        %v527 = vmax.f32 %v503, 0.0
        %v528 = vmax.f32 %v504, 0.0
        %v529 = vmax.f32 %v505, 0.0
        %v530 = vmax.f32 %v506, 0.0
        %v531 = vmax.f32 %v507, 0.0
        %v532 = vmax.f32 %v508, 0.0
        %v533 = vmax.f32 %v509, 0.0
        %v534 = vmax.f32 %v510, 0.0
        %v535 = vmax.f32 %v511, 0.0
        %s536 = smul.addr %s339, 8
        %s537 = scalar_lea.vmem %s331, %s536
        %v538 = vld [vmem:[%s537] sm:$0xff]
        %v539 = vld [vmem:[%s537 + $0x8] sm:$0xff]
        %v540 = vld [vmem:[%s537 + $0x20] sm:$0xff]
        %v541 = vld [vmem:[%s537 + $0x28] sm:$0xff]
        %v542 = vld [vmem:[%s537 + $0x40] sm:$0xff]
        %v543 = vld [vmem:[%s537 + $0x48] sm:$0xff]
        %v544 = vld [vmem:[%s537 + $0x60] sm:$0xff]
        %v545 = vld [vmem:[%s537 + $0x68] sm:$0xff]
        %v546 = vld [vmem:[%s537 + $0x80] sm:$0xff]
        %v547 = vld [vmem:[%s537 + $0x88] sm:$0xff]
        %v548 = vmax.f32 %v538, 0.0
        %v549 = vmax.f32 %v539, 0.0
        %v550 = vmax.f32 %v540, 0.0
        %v551 = vmax.f32 %v541, 0.0
        %v552 = vmax.f32 %v542, 0.0
        %v553 = vmax.f32 %v543, 0.0
        %v554 = vmax.f32 %v544, 0.0
        %v555 = vmax.f32 %v545, 0.0
        %v556 = vmax.f32 %v546, 0.0
        %v557 = vmax.f32 %v547, 0.0
        %v558 = vld [vmem:[%s537] sm:$0xfe]
        %v559 = vld [vmem:[%s537 + $0x8] sm:$0xfe]
        %v560 = vld [vmem:[%s537 + $0x10] sm:$0x1]
        %v561 = vld [vmem:[%s537 + $0x18] sm:$0x1]
        %v562 = vld [vmem:[%s537 + $0x20] sm:$0xfe]
        %v563 = vld [vmem:[%s537 + $0x28] sm:$0xfe]
        %v564 = vld [vmem:[%s537 + $0x30] sm:$0x1]
        %v565 = vld [vmem:[%s537 + $0x38] sm:$0x1]
        %v566 = vld [vmem:[%s537 + $0x40] sm:$0xfe]
        %v567 = vld [vmem:[%s537 + $0x48] sm:$0xfe]
        %v568 = vld [vmem:[%s537 + $0x50] sm:$0x1]
        %v569 = vld [vmem:[%s537 + $0x58] sm:$0x1]
        %v570 = vld [vmem:[%s537 + $0x60] sm:$0xfe]
        %v571 = vld [vmem:[%s537 + $0x68] sm:$0xfe]
        %v572 = vld [vmem:[%s537 + $0x70] sm:$0x1]
        %v573 = vld [vmem:[%s537 + $0x78] sm:$0x1]
        %v574 = vld [vmem:[%s537 + $0x80] sm:$0xfe]
        %v575 = vld [vmem:[%s537 + $0x88] sm:$0xfe]
        %v576 = vld [vmem:[%s537 + $0x90] sm:$0x1]
        %v577 = vld [vmem:[%s537 + $0x98] sm:$0x1]
        %v578 = vmax.f32 %v558, 0.0
        %v579 = vmax.f32 %v559, 0.0
        %v580 = vmax.f32 %v560, 0.0
        %v581 = vmax.f32 %v561, 0.0
        %v582 = vmax.f32 %v562, 0.0
        %v583 = vmax.f32 %v563, 0.0
        %v584 = vmax.f32 %v564, 0.0
        %v585 = vmax.f32 %v565, 0.0
        %v586 = vmax.f32 %v566, 0.0
        %v587 = vmax.f32 %v567, 0.0
        %v588 = vmax.f32 %v568, 0.0
        %v589 = vmax.f32 %v569, 0.0
        %v590 = vmax.f32 %v570, 0.0
        %v591 = vmax.f32 %v571, 0.0
        %v592 = vmax.f32 %v572, 0.0
        %v593 = vmax.f32 %v573, 0.0
        %v594 = vmax.f32 %v574, 0.0
        %v595 = vmax.f32 %v575, 0.0
        %v596 = vmax.f32 %v576, 0.0
        %v597 = vmax.f32 %v577, 0.0
        %v598 = vld [vmem:[%s537] sm:$0xfc]
        %v599 = vld [vmem:[%s537 + $0x8] sm:$0xfc]
        %v600 = vld [vmem:[%s537 + $0x10] sm:$0x3]
        %v601 = vld [vmem:[%s537 + $0x18] sm:$0x3]
        %v602 = vld [vmem:[%s537 + $0x20] sm:$0xfc]
        %v603 = vld [vmem:[%s537 + $0x28] sm:$0xfc]
        %v604 = vld [vmem:[%s537 + $0x30] sm:$0x3]
        %v605 = vld [vmem:[%s537 + $0x38] sm:$0x3]
        %v606 = vld [vmem:[%s537 + $0x40] sm:$0xfc]
        %v607 = vld [vmem:[%s537 + $0x48] sm:$0xfc]
        %v608 = vld [vmem:[%s537 + $0x50] sm:$0x3]
        %v609 = vld [vmem:[%s537 + $0x58] sm:$0x3]
        %v610 = vld [vmem:[%s537 + $0x60] sm:$0xfc]
        %v611 = vld [vmem:[%s537 + $0x68] sm:$0xfc]
        %v612 = vld [vmem:[%s537 + $0x70] sm:$0x3]
        %v613 = vld [vmem:[%s537 + $0x78] sm:$0x3]
        %v614 = vld [vmem:[%s537 + $0x80] sm:$0xfc]
        %v615 = vld [vmem:[%s537 + $0x88] sm:$0xfc]
        %v616 = vld [vmem:[%s537 + $0x90] sm:$0x3]
        %v617 = vld [vmem:[%s537 + $0x98] sm:$0x3]
        %v618 = vmax.f32 %v598, 0.0
        %v619 = vmax.f32 %v599, 0.0
        %v620 = vmax.f32 %v600, 0.0
        %v621 = vmax.f32 %v601, 0.0
        %v622 = vmax.f32 %v602, 0.0
        %v623 = vmax.f32 %v603, 0.0
        %v624 = vmax.f32 %v604, 0.0
        %v625 = vmax.f32 %v605, 0.0
        %v626 = vmax.f32 %v606, 0.0
        %v627 = vmax.f32 %v607, 0.0
        %v628 = vmax.f32 %v608, 0.0
        %v629 = vmax.f32 %v609, 0.0
        %v630 = vmax.f32 %v610, 0.0
        %v631 = vmax.f32 %v611, 0.0
        %v632 = vmax.f32 %v612, 0.0
        %v633 = vmax.f32 %v613, 0.0
        %v634 = vmax.f32 %v614, 0.0
        %v635 = vmax.f32 %v615, 0.0
        %v636 = vmax.f32 %v616, 0.0
        %v637 = vmax.f32 %v617, 0.0
        %s638 = smul.addr %s339, 8
        %s639 = scalar_lea.vmem %s336, %s638
        %v640 = vld [vmem:[%s639] sm:$0xff]
        %v641 = vld [vmem:[%s639 + $0x8] sm:$0xff]
        %v642 = vld [vmem:[%s639 + $0x20] sm:$0xff]
        %v643 = vld [vmem:[%s639 + $0x28] sm:$0xff]
        %v644 = vld [vmem:[%s639 + $0x40] sm:$0xff]
        %v645 = vld [vmem:[%s639 + $0x48] sm:$0xff]
        %v646 = vld [vmem:[%s639 + $0x60] sm:$0xff]
        %v647 = vld [vmem:[%s639 + $0x68] sm:$0xff]
        %v648 = vld [vmem:[%s639 + $0x80] sm:$0xff]
        %v649 = vld [vmem:[%s639 + $0x88] sm:$0xff]
        %v650 = vmax.f32 %v640, 0.0
        %v651 = vmax.f32 %v641, 0.0
        %v652 = vmax.f32 %v642, 0.0
        %v653 = vmax.f32 %v643, 0.0
        %v654 = vmax.f32 %v644, 0.0
        %v655 = vmax.f32 %v645, 0.0
        %v656 = vmax.f32 %v646, 0.0
        %v657 = vmax.f32 %v647, 0.0
        %v658 = vmax.f32 %v648, 0.0
        %v659 = vmax.f32 %v649, 0.0
        %v660 = vld [vmem:[%s639] sm:$0xfe]
        %v661 = vld [vmem:[%s639 + $0x8] sm:$0xfe]
        %v662 = vld [vmem:[%s639 + $0x10] sm:$0x1]
        %v663 = vld [vmem:[%s639 + $0x18] sm:$0x1]
        %v664 = vld [vmem:[%s639 + $0x20] sm:$0xfe]
        %v665 = vld [vmem:[%s639 + $0x28] sm:$0xfe]
        %v666 = vld [vmem:[%s639 + $0x30] sm:$0x1]
        %v667 = vld [vmem:[%s639 + $0x38] sm:$0x1]
        %v668 = vld [vmem:[%s639 + $0x40] sm:$0xfe]
        %v669 = vld [vmem:[%s639 + $0x48] sm:$0xfe]
        %v670 = vld [vmem:[%s639 + $0x50] sm:$0x1]
        %v671 = vld [vmem:[%s639 + $0x58] sm:$0x1]
        %v672 = vld [vmem:[%s639 + $0x60] sm:$0xfe]
        %v673 = vld [vmem:[%s639 + $0x68] sm:$0xfe]
        %v674 = vld [vmem:[%s639 + $0x70] sm:$0x1]
        %v675 = vld [vmem:[%s639 + $0x78] sm:$0x1]
        %v676 = vld [vmem:[%s639 + $0x80] sm:$0xfe]
        %v677 = vld [vmem:[%s639 + $0x88] sm:$0xfe]
        %v678 = vld [vmem:[%s639 + $0x90] sm:$0x1]
        %v679 = vld [vmem:[%s639 + $0x98] sm:$0x1]
        %v680 = vmax.f32 %v660, 0.0
        %v681 = vmax.f32 %v661, 0.0
        %v682 = vmax.f32 %v662, 0.0
        %v683 = vmax.f32 %v663, 0.0
        %v684 = vmax.f32 %v664, 0.0
        %v685 = vmax.f32 %v665, 0.0
        %v686 = vmax.f32 %v666, 0.0
        %v687 = vmax.f32 %v667, 0.0
        %v688 = vmax.f32 %v668, 0.0
        %v689 = vmax.f32 %v669, 0.0
        %v690 = vmax.f32 %v670, 0.0
        %v691 = vmax.f32 %v671, 0.0
        %v692 = vmax.f32 %v672, 0.0
        %v693 = vmax.f32 %v673, 0.0
        %v694 = vmax.f32 %v674, 0.0
        %v695 = vmax.f32 %v675, 0.0
        %v696 = vmax.f32 %v676, 0.0
        %v697 = vmax.f32 %v677, 0.0
        %v698 = vmax.f32 %v678, 0.0
        %v699 = vmax.f32 %v679, 0.0
        %v700 = vld [vmem:[%s4] sm:$0xff]
        %v701 = vld [vmem:[%s4 + $0x8] sm:$0xff]
        %v702 = vld [vmem:[%s4 + $0x10] sm:$0xff]
        %v703 = vld [vmem:[%s4 + $0x18] sm:$0xff]
        %v704 = vld [vmem:[%s4 + $0x20] sm:$0xff]
        %v705 = vld [vmem:[%s4 + $0x28] sm:$0xff]
        %v706 = vld [vmem:[%s4 + $0x30] sm:$0x1]
        %v707 = vld [vmem:[%s4 + $0x38] sm:$0x1]
        %v708 = vlaneseq
        %v709 = vshrl.u32 %v708, 7
        %v710 = vsub.s32 0, %v709
        %v711 = vrot.slane %v700, %v710
        %v712 = vlaneseq
        %v713 = vshrl.u32 %v712, 7
        %v714 = vsub.s32 0, %v713
        %v715 = vrot.slane %v701, %v714
        %v716 = vmul.f32 %v354, %v711
        %v717 = vmul.f32 %v355, %v715
        %v718 = vmul.f32 %v356, %v711
        %v719 = vmul.f32 %v357, %v715
        %v720 = vmul.f32 %v358, %v711
        %v721 = vmul.f32 %v359, %v715
        %v722 = vmul.f32 %v360, %v711
        %v723 = vmul.f32 %v361, %v715
        %v724 = vadd.f32 %v716, 0.0
        %v725 = vadd.f32 %v717, 0.0
        %v726 = vadd.f32 %v718, 0.0
        %v727 = vadd.f32 %v719, 0.0
        %v728 = vadd.f32 %v720, 0.0
        %v729 = vadd.f32 %v721, 0.0
        %v730 = vadd.f32 %v722, 0.0
        %v731 = vadd.f32 %v723, 0.0
        %v732 = vlaneseq
        %v733 = vshrl.u32 %v732, 7
        %v734 = vsub.s32 1, %v733
        %v735 = vrot.slane %v700, %v734
        %v736 = vlaneseq
        %v737 = vshrl.u32 %v736, 7
        %v738 = vsub.s32 1, %v737
        %v739 = vrot.slane %v701, %v738
        %v740 = vmul.f32 %v476, %v735
        %v741 = vmul.f32 %v477, %v739
        %v742 = vmul.f32 %v478, %v735
        %v743 = vmul.f32 %v479, %v739
        %v744 = vmul.f32 %v480, %v735
        %v745 = vmul.f32 %v481, %v739
        %v746 = vmul.f32 %v482, %v735
        %v747 = vmul.f32 %v483, %v739
        %v748 = vadd.f32 %v724, %v740
        %v749 = vadd.f32 %v725, %v741
        %v750 = vadd.f32 %v726, %v742
        %v751 = vadd.f32 %v727, %v743
        %v752 = vadd.f32 %v728, %v744
        %v753 = vadd.f32 %v729, %v745
        %v754 = vadd.f32 %v730, %v746
        %v755 = vadd.f32 %v731, %v747
        %v756 = vlaneseq
        %v757 = vshrl.u32 %v756, 7
        %v758 = vsub.s32 2, %v757
        %v759 = vrot.slane %v700, %v758
        %v760 = vlaneseq
        %v761 = vshrl.u32 %v760, 7
        %v762 = vsub.s32 2, %v761
        %v763 = vrot.slane %v701, %v762
        %v764 = vmul.f32 %v390, %v759
        %v765 = vmul.f32 %v391, %v763
        %v766 = vmul.f32 %v392, %v759
        %v767 = vmul.f32 %v393, %v763
        %v768 = vmul.f32 %v394, %v759
        %v769 = vmul.f32 %v395, %v763
        %v770 = vmul.f32 %v396, %v759
        %v771 = vmul.f32 %v397, %v763
        %v772 = vmul.f32 %v398, %v759
        %v773 = vmul.f32 %v399, %v763
        %v774 = vmul.f32 %v400, %v759
        %v775 = vmul.f32 %v401, %v763
        %v776 = vmul.f32 %v402, %v759
        %v777 = vmul.f32 %v403, %v763
        %v778 = vmul.f32 %v404, %v759
        %v779 = vmul.f32 %v405, %v763
        %vm796 = vcmask 1046528
        %v797 = vrot.slane %v764, 1
        %v798 = vrot.slane %v766, 1
        %v799 = vsel %vm796, %v797, %v798
        %v800 = vrot.slane %v765, 1
        %v801 = vrot.slane %v767, 1
        %v802 = vsel %vm796, %v800, %v801
        %v803 = vrot.slane %v768, 1
        %v804 = vrot.slane %v770, 1
        %v805 = vsel %vm796, %v803, %v804
        %v806 = vrot.slane %v769, 1
        %v807 = vrot.slane %v771, 1
        %v808 = vsel %vm796, %v806, %v807
        %v809 = vrot.slane %v772, 1
        %v810 = vrot.slane %v774, 1
        %v811 = vsel %vm796, %v809, %v810
        %v812 = vrot.slane %v773, 1
        %v813 = vrot.slane %v775, 1
        %v814 = vsel %vm796, %v812, %v813
        %v815 = vrot.slane %v776, 1
        %v816 = vrot.slane %v778, 1
        %v817 = vsel %vm796, %v815, %v816
        %v818 = vrot.slane %v777, 1
        %v819 = vrot.slane %v779, 1
        %v820 = vsel %vm796, %v818, %v819
        %v829 = vadd.f32 %v748, %v799
        %v830 = vadd.f32 %v749, %v802
        %v831 = vadd.f32 %v750, %v805
        %v832 = vadd.f32 %v751, %v808
        %v833 = vadd.f32 %v752, %v811
        %v834 = vadd.f32 %v753, %v814
        %v835 = vadd.f32 %v754, %v817
        %v836 = vadd.f32 %v755, %v820
        %v837 = vlaneseq
        %v838 = vshrl.u32 %v837, 7
        %v839 = vsub.s32 3, %v838
        %v840 = vrot.slane %v700, %v839
        %v841 = vlaneseq
        %v842 = vshrl.u32 %v841, 7
        %v843 = vsub.s32 3, %v842
        %v844 = vrot.slane %v701, %v843
        %v845 = vmul.f32 %v512, %v840
        %v846 = vmul.f32 %v513, %v844
        %v847 = vmul.f32 %v514, %v840
        %v848 = vmul.f32 %v515, %v844
        %v849 = vmul.f32 %v516, %v840
        %v850 = vmul.f32 %v517, %v844
        %v851 = vmul.f32 %v518, %v840
        %v852 = vmul.f32 %v519, %v844
        %v853 = vmul.f32 %v520, %v840
        %v854 = vmul.f32 %v521, %v844
        %v855 = vmul.f32 %v522, %v840
        %v856 = vmul.f32 %v523, %v844
        %v857 = vmul.f32 %v524, %v840
        %v858 = vmul.f32 %v525, %v844
        %v859 = vmul.f32 %v526, %v840
        %v860 = vmul.f32 %v527, %v844
        %v877 = vrot.slane %v845, 1
        %v878 = vrot.slane %v847, 1
        %v879 = vsel %vm796, %v877, %v878
        %v880 = vrot.slane %v846, 1
        %v881 = vrot.slane %v848, 1
        %v882 = vsel %vm796, %v880, %v881
        %v883 = vrot.slane %v849, 1
        %v884 = vrot.slane %v851, 1
        %v885 = vsel %vm796, %v883, %v884
        %v886 = vrot.slane %v850, 1
        %v887 = vrot.slane %v852, 1
        %v888 = vsel %vm796, %v886, %v887
        %v889 = vrot.slane %v853, 1
        %v890 = vrot.slane %v855, 1
        %v891 = vsel %vm796, %v889, %v890
        %v892 = vrot.slane %v854, 1
        %v893 = vrot.slane %v856, 1
        %v894 = vsel %vm796, %v892, %v893
        %v895 = vrot.slane %v857, 1
        %v896 = vrot.slane %v859, 1
        %v897 = vsel %vm796, %v895, %v896
        %v898 = vrot.slane %v858, 1
        %v899 = vrot.slane %v860, 1
        %v900 = vsel %vm796, %v898, %v899
        %v909 = vadd.f32 %v829, %v879
        %v910 = vadd.f32 %v830, %v882
        %v911 = vadd.f32 %v831, %v885
        %v912 = vadd.f32 %v832, %v888
        %v913 = vadd.f32 %v833, %v891
        %v914 = vadd.f32 %v834, %v894
        %v915 = vadd.f32 %v835, %v897
        %v916 = vadd.f32 %v836, %v900
        %v917 = vlaneseq
        %v918 = vshrl.u32 %v917, 7
        %v919 = vsub.s32 4, %v918
        %v920 = vrot.slane %v700, %v919
        %v921 = vlaneseq
        %v922 = vshrl.u32 %v921, 7
        %v923 = vsub.s32 4, %v922
        %v924 = vrot.slane %v701, %v923
        %v925 = vmul.f32 %v438, %v920
        %v926 = vmul.f32 %v439, %v924
        %v927 = vmul.f32 %v440, %v920
        %v928 = vmul.f32 %v441, %v924
        %v929 = vmul.f32 %v442, %v920
        %v930 = vmul.f32 %v443, %v924
        %v931 = vmul.f32 %v444, %v920
        %v932 = vmul.f32 %v445, %v924
        %v933 = vmul.f32 %v446, %v920
        %v934 = vmul.f32 %v447, %v924
        %v935 = vmul.f32 %v448, %v920
        %v936 = vmul.f32 %v449, %v924
        %v937 = vmul.f32 %v450, %v920
        %v938 = vmul.f32 %v451, %v924
        %v939 = vmul.f32 %v452, %v920
        %v940 = vmul.f32 %v453, %v924
        %vm957 = vcmask 1045504
        %v958 = vrot.slane %v925, 2
        %v959 = vrot.slane %v927, 2
        %v960 = vsel %vm957, %v958, %v959
        %v961 = vrot.slane %v926, 2
        %v962 = vrot.slane %v928, 2
        %v963 = vsel %vm957, %v961, %v962
        %v964 = vrot.slane %v929, 2
        %v965 = vrot.slane %v931, 2
        %v966 = vsel %vm957, %v964, %v965
        %v967 = vrot.slane %v930, 2
        %v968 = vrot.slane %v932, 2
        %v969 = vsel %vm957, %v967, %v968
        %v970 = vrot.slane %v933, 2
        %v971 = vrot.slane %v935, 2
        %v972 = vsel %vm957, %v970, %v971
        %v973 = vrot.slane %v934, 2
        %v974 = vrot.slane %v936, 2
        %v975 = vsel %vm957, %v973, %v974
        %v976 = vrot.slane %v937, 2
        %v977 = vrot.slane %v939, 2
        %v978 = vsel %vm957, %v976, %v977
        %v979 = vrot.slane %v938, 2
        %v980 = vrot.slane %v940, 2
        %v981 = vsel %vm957, %v979, %v980
        %v990 = vadd.f32 %v909, %v960
        %v991 = vadd.f32 %v910, %v963
        %v992 = vadd.f32 %v911, %v966
        %v993 = vadd.f32 %v912, %v969
        %v994 = vadd.f32 %v913, %v972
        %v995 = vadd.f32 %v914, %v975
        %v996 = vadd.f32 %v915, %v978
        %v997 = vadd.f32 %v916, %v981
        %v998 = vlaneseq
        %v999 = vshrl.u32 %v998, 7
        %v1000 = vsub.s32 5, %v999
        %v1001 = vrot.slane %v700, %v1000
        %v1002 = vlaneseq
        %v1003 = vshrl.u32 %v1002, 7
        %v1004 = vsub.s32 5, %v1003
        %v1005 = vrot.slane %v701, %v1004
        %v1006 = vmul.f32 %v548, %v1001
        %v1007 = vmul.f32 %v549, %v1005
        %v1008 = vmul.f32 %v550, %v1001
        %v1009 = vmul.f32 %v551, %v1005
        %v1010 = vmul.f32 %v552, %v1001
        %v1011 = vmul.f32 %v553, %v1005
        %v1012 = vmul.f32 %v554, %v1001
        %v1013 = vmul.f32 %v555, %v1005
        %v1014 = vadd.f32 %v990, %v1006
        %v1015 = vadd.f32 %v991, %v1007
        %v1016 = vadd.f32 %v992, %v1008
        %v1017 = vadd.f32 %v993, %v1009
        %v1018 = vadd.f32 %v994, %v1010
        %v1019 = vadd.f32 %v995, %v1011
        %v1020 = vadd.f32 %v996, %v1012
        %v1021 = vadd.f32 %v997, %v1013
        %v1022 = vlaneseq
        %v1023 = vshrl.u32 %v1022, 7
        %v1024 = vsub.s32 6, %v1023
        %v1025 = vrot.slane %v700, %v1024
        %v1026 = vlaneseq
        %v1027 = vshrl.u32 %v1026, 7
        %v1028 = vsub.s32 6, %v1027
        %v1029 = vrot.slane %v701, %v1028
        %v1030 = vmul.f32 %v650, %v1025
        %v1031 = vmul.f32 %v651, %v1029
        %v1032 = vmul.f32 %v652, %v1025
        %v1033 = vmul.f32 %v653, %v1029
        %v1034 = vmul.f32 %v654, %v1025
        %v1035 = vmul.f32 %v655, %v1029
        %v1036 = vmul.f32 %v656, %v1025
        %v1037 = vmul.f32 %v657, %v1029
        %v1038 = vadd.f32 %v1014, %v1030
        %v1039 = vadd.f32 %v1015, %v1031
        %v1040 = vadd.f32 %v1016, %v1032
        %v1041 = vadd.f32 %v1017, %v1033
        %v1042 = vadd.f32 %v1018, %v1034
        %v1043 = vadd.f32 %v1019, %v1035
        %v1044 = vadd.f32 %v1020, %v1036
        %v1045 = vadd.f32 %v1021, %v1037
        %v1046 = vlaneseq
        %v1047 = vshrl.u32 %v1046, 7
        %v1048 = vsub.s32 7, %v1047
        %v1049 = vrot.slane %v700, %v1048
        %v1050 = vlaneseq
        %v1051 = vshrl.u32 %v1050, 7
        %v1052 = vsub.s32 7, %v1051
        %v1053 = vrot.slane %v701, %v1052
        %v1054 = vmul.f32 %v578, %v1049
        %v1055 = vmul.f32 %v579, %v1053
        %v1056 = vmul.f32 %v580, %v1049
        %v1057 = vmul.f32 %v581, %v1053
        %v1058 = vmul.f32 %v582, %v1049
        %v1059 = vmul.f32 %v583, %v1053
        %v1060 = vmul.f32 %v584, %v1049
        %v1061 = vmul.f32 %v585, %v1053
        %v1062 = vmul.f32 %v586, %v1049
        %v1063 = vmul.f32 %v587, %v1053
        %v1064 = vmul.f32 %v588, %v1049
        %v1065 = vmul.f32 %v589, %v1053
        %v1066 = vmul.f32 %v590, %v1049
        %v1067 = vmul.f32 %v591, %v1053
        %v1068 = vmul.f32 %v592, %v1049
        %v1069 = vmul.f32 %v593, %v1053
        %v1086 = vrot.slane %v1054, 1
        %v1087 = vrot.slane %v1056, 1
        %v1088 = vsel %vm796, %v1086, %v1087
        %v1089 = vrot.slane %v1055, 1
        %v1090 = vrot.slane %v1057, 1
        %v1091 = vsel %vm796, %v1089, %v1090
        %v1092 = vrot.slane %v1058, 1
        %v1093 = vrot.slane %v1060, 1
        %v1094 = vsel %vm796, %v1092, %v1093
        %v1095 = vrot.slane %v1059, 1
        %v1096 = vrot.slane %v1061, 1
        %v1097 = vsel %vm796, %v1095, %v1096
        %v1098 = vrot.slane %v1062, 1
        %v1099 = vrot.slane %v1064, 1
        %v1100 = vsel %vm796, %v1098, %v1099
        %v1101 = vrot.slane %v1063, 1
        %v1102 = vrot.slane %v1065, 1
        %v1103 = vsel %vm796, %v1101, %v1102
        %v1104 = vrot.slane %v1066, 1
        %v1105 = vrot.slane %v1068, 1
        %v1106 = vsel %vm796, %v1104, %v1105
        %v1107 = vrot.slane %v1067, 1
        %v1108 = vrot.slane %v1069, 1
        %v1109 = vsel %vm796, %v1107, %v1108
        %v1118 = vadd.f32 %v1038, %v1088
        %v1119 = vadd.f32 %v1039, %v1091
        %v1120 = vadd.f32 %v1040, %v1094
        %v1121 = vadd.f32 %v1041, %v1097
        %v1122 = vadd.f32 %v1042, %v1100
        %v1123 = vadd.f32 %v1043, %v1103
        %v1124 = vadd.f32 %v1044, %v1106
        %v1125 = vadd.f32 %v1045, %v1109
        %v1126 = vlaneseq
        %v1127 = vshrl.u32 %v1126, 7
        %v1128 = vsub.s32 0, %v1127
        %v1129 = vrot.slane %v702, %v1128
        %v1130 = vlaneseq
        %v1131 = vshrl.u32 %v1130, 7
        %v1132 = vsub.s32 0, %v1131
        %v1133 = vrot.slane %v703, %v1132
        %v1134 = vmul.f32 %v680, %v1129
        %v1135 = vmul.f32 %v681, %v1133
        %v1136 = vmul.f32 %v682, %v1129
        %v1137 = vmul.f32 %v683, %v1133
        %v1138 = vmul.f32 %v684, %v1129
        %v1139 = vmul.f32 %v685, %v1133
        %v1140 = vmul.f32 %v686, %v1129
        %v1141 = vmul.f32 %v687, %v1133
        %v1142 = vmul.f32 %v688, %v1129
        %v1143 = vmul.f32 %v689, %v1133
        %v1144 = vmul.f32 %v690, %v1129
        %v1145 = vmul.f32 %v691, %v1133
        %v1146 = vmul.f32 %v692, %v1129
        %v1147 = vmul.f32 %v693, %v1133
        %v1148 = vmul.f32 %v694, %v1129
        %v1149 = vmul.f32 %v695, %v1133
        %v1166 = vrot.slane %v1134, 1
        %v1167 = vrot.slane %v1136, 1
        %v1168 = vsel %vm796, %v1166, %v1167
        %v1169 = vrot.slane %v1135, 1
        %v1170 = vrot.slane %v1137, 1
        %v1171 = vsel %vm796, %v1169, %v1170
        %v1172 = vrot.slane %v1138, 1
        %v1173 = vrot.slane %v1140, 1
        %v1174 = vsel %vm796, %v1172, %v1173
        %v1175 = vrot.slane %v1139, 1
        %v1176 = vrot.slane %v1141, 1
        %v1177 = vsel %vm796, %v1175, %v1176
        %v1178 = vrot.slane %v1142, 1
        %v1179 = vrot.slane %v1144, 1
        %v1180 = vsel %vm796, %v1178, %v1179
        %v1181 = vrot.slane %v1143, 1
        %v1182 = vrot.slane %v1145, 1
        %v1183 = vsel %vm796, %v1181, %v1182
        %v1184 = vrot.slane %v1146, 1
        %v1185 = vrot.slane %v1148, 1
        %v1186 = vsel %vm796, %v1184, %v1185
        %v1187 = vrot.slane %v1147, 1
        %v1188 = vrot.slane %v1149, 1
        %v1189 = vsel %vm796, %v1187, %v1188
        %v1198 = vadd.f32 %v1118, %v1168
        %v1199 = vadd.f32 %v1119, %v1171
        %v1200 = vadd.f32 %v1120, %v1174
        %v1201 = vadd.f32 %v1121, %v1177
        %v1202 = vadd.f32 %v1122, %v1180
        %v1203 = vadd.f32 %v1123, %v1183
        %v1204 = vadd.f32 %v1124, %v1186
        %v1205 = vadd.f32 %v1125, %v1189
        %v1206 = vlaneseq
        %v1207 = vshrl.u32 %v1206, 7
        %v1208 = vsub.s32 1, %v1207
        %v1209 = vrot.slane %v702, %v1208
        %v1210 = vlaneseq
        %v1211 = vshrl.u32 %v1210, 7
        %v1212 = vsub.s32 1, %v1211
        %v1213 = vrot.slane %v703, %v1212
        %v1214 = vmul.f32 %v618, %v1209
        %v1215 = vmul.f32 %v619, %v1213
        %v1216 = vmul.f32 %v620, %v1209
        %v1217 = vmul.f32 %v621, %v1213
        %v1218 = vmul.f32 %v622, %v1209
        %v1219 = vmul.f32 %v623, %v1213
        %v1220 = vmul.f32 %v624, %v1209
        %v1221 = vmul.f32 %v625, %v1213
        %v1222 = vmul.f32 %v626, %v1209
        %v1223 = vmul.f32 %v627, %v1213
        %v1224 = vmul.f32 %v628, %v1209
        %v1225 = vmul.f32 %v629, %v1213
        %v1226 = vmul.f32 %v630, %v1209
        %v1227 = vmul.f32 %v631, %v1213
        %v1228 = vmul.f32 %v632, %v1209
        %v1229 = vmul.f32 %v633, %v1213
        %v1246 = vrot.slane %v1214, 2
        %v1247 = vrot.slane %v1216, 2
        %v1248 = vsel %vm957, %v1246, %v1247
        %v1249 = vrot.slane %v1215, 2
        %v1250 = vrot.slane %v1217, 2
        %v1251 = vsel %vm957, %v1249, %v1250
        %v1252 = vrot.slane %v1218, 2
        %v1253 = vrot.slane %v1220, 2
        %v1254 = vsel %vm957, %v1252, %v1253
        %v1255 = vrot.slane %v1219, 2
        %v1256 = vrot.slane %v1221, 2
        %v1257 = vsel %vm957, %v1255, %v1256
        %v1258 = vrot.slane %v1222, 2
        %v1259 = vrot.slane %v1224, 2
        %v1260 = vsel %vm957, %v1258, %v1259
        %v1261 = vrot.slane %v1223, 2
        %v1262 = vrot.slane %v1225, 2
        %v1263 = vsel %vm957, %v1261, %v1262
        %v1264 = vrot.slane %v1226, 2
        %v1265 = vrot.slane %v1228, 2
        %v1266 = vsel %vm957, %v1264, %v1265
        %v1267 = vrot.slane %v1227, 2
        %v1268 = vrot.slane %v1229, 2
        %v1269 = vsel %vm957, %v1267, %v1268
        %v1278 = vadd.f32 %v1198, %v1248
        %v1279 = vadd.f32 %v1199, %v1251
        %v1280 = vadd.f32 %v1200, %v1254
        %v1281 = vadd.f32 %v1201, %v1257
        %v1282 = vadd.f32 %v1202, %v1260
        %v1283 = vadd.f32 %v1203, %v1263
        %v1284 = vadd.f32 %v1204, %v1266
        %v1285 = vadd.f32 %v1205, %v1269
        %v1286 = vlaneseq
        %v1287 = vshrl.u32 %v1286, 7
        %v1288 = vsub.s32 2, %v1287
        %v1289 = vrot.slane %v702, %v1288
        %v1290 = vlaneseq
        %v1291 = vshrl.u32 %v1290, 7
        %v1292 = vsub.s32 2, %v1291
        %v1293 = vrot.slane %v703, %v1292
        %v1294 = vmul.f32 %v356, %v1289
        %v1295 = vmul.f32 %v357, %v1293
        %v1296 = vmul.f32 %v358, %v1289
        %v1297 = vmul.f32 %v359, %v1293
        %v1298 = vmul.f32 %v360, %v1289
        %v1299 = vmul.f32 %v361, %v1293
        %v1300 = vmul.f32 %v362, %v1289
        %v1301 = vmul.f32 %v363, %v1293
        %v1302 = vadd.f32 %v1278, %v1294
        %v1303 = vadd.f32 %v1279, %v1295
        %v1304 = vadd.f32 %v1280, %v1296
        %v1305 = vadd.f32 %v1281, %v1297
        %v1306 = vadd.f32 %v1282, %v1298
        %v1307 = vadd.f32 %v1283, %v1299
        %v1308 = vadd.f32 %v1284, %v1300
        %v1309 = vadd.f32 %v1285, %v1301
        %v1310 = vlaneseq
        %v1311 = vshrl.u32 %v1310, 7
        %v1312 = vsub.s32 3, %v1311
        %v1313 = vrot.slane %v702, %v1312
        %v1314 = vlaneseq
        %v1315 = vshrl.u32 %v1314, 7
        %v1316 = vsub.s32 3, %v1315
        %v1317 = vrot.slane %v703, %v1316
        %v1318 = vmul.f32 %v478, %v1313
        %v1319 = vmul.f32 %v479, %v1317
        %v1320 = vmul.f32 %v480, %v1313
        %v1321 = vmul.f32 %v481, %v1317
        %v1322 = vmul.f32 %v482, %v1313
        %v1323 = vmul.f32 %v483, %v1317
        %v1324 = vmul.f32 %v484, %v1313
        %v1325 = vmul.f32 %v485, %v1317
        %v1326 = vadd.f32 %v1302, %v1318
        %v1327 = vadd.f32 %v1303, %v1319
        %v1328 = vadd.f32 %v1304, %v1320
        %v1329 = vadd.f32 %v1305, %v1321
        %v1330 = vadd.f32 %v1306, %v1322
        %v1331 = vadd.f32 %v1307, %v1323
        %v1332 = vadd.f32 %v1308, %v1324
        %v1333 = vadd.f32 %v1309, %v1325
        %v1334 = vlaneseq
        %v1335 = vshrl.u32 %v1334, 7
        %v1336 = vsub.s32 4, %v1335
        %v1337 = vrot.slane %v702, %v1336
        %v1338 = vlaneseq
        %v1339 = vshrl.u32 %v1338, 7
        %v1340 = vsub.s32 4, %v1339
        %v1341 = vrot.slane %v703, %v1340
        %v1342 = vmul.f32 %v394, %v1337
        %v1343 = vmul.f32 %v395, %v1341
        %v1344 = vmul.f32 %v396, %v1337
        %v1345 = vmul.f32 %v397, %v1341
        %v1346 = vmul.f32 %v398, %v1337
        %v1347 = vmul.f32 %v399, %v1341
        %v1348 = vmul.f32 %v400, %v1337
        %v1349 = vmul.f32 %v401, %v1341
        %v1350 = vmul.f32 %v402, %v1337
        %v1351 = vmul.f32 %v403, %v1341
        %v1352 = vmul.f32 %v404, %v1337
        %v1353 = vmul.f32 %v405, %v1341
        %v1354 = vmul.f32 %v406, %v1337
        %v1355 = vmul.f32 %v407, %v1341
        %v1356 = vmul.f32 %v408, %v1337
        %v1357 = vmul.f32 %v409, %v1341
        %v1374 = vrot.slane %v1342, 1
        %v1375 = vrot.slane %v1344, 1
        %v1376 = vsel %vm796, %v1374, %v1375
        %v1377 = vrot.slane %v1343, 1
        %v1378 = vrot.slane %v1345, 1
        %v1379 = vsel %vm796, %v1377, %v1378
        %v1380 = vrot.slane %v1346, 1
        %v1381 = vrot.slane %v1348, 1
        %v1382 = vsel %vm796, %v1380, %v1381
        %v1383 = vrot.slane %v1347, 1
        %v1384 = vrot.slane %v1349, 1
        %v1385 = vsel %vm796, %v1383, %v1384
        %v1386 = vrot.slane %v1350, 1
        %v1387 = vrot.slane %v1352, 1
        %v1388 = vsel %vm796, %v1386, %v1387
        %v1389 = vrot.slane %v1351, 1
        %v1390 = vrot.slane %v1353, 1
        %v1391 = vsel %vm796, %v1389, %v1390
        %v1392 = vrot.slane %v1354, 1
        %v1393 = vrot.slane %v1356, 1
        %v1394 = vsel %vm796, %v1392, %v1393
        %v1395 = vrot.slane %v1355, 1
        %v1396 = vrot.slane %v1357, 1
        %v1397 = vsel %vm796, %v1395, %v1396
        %v1406 = vadd.f32 %v1326, %v1376
        %v1407 = vadd.f32 %v1327, %v1379
        %v1408 = vadd.f32 %v1328, %v1382
        %v1409 = vadd.f32 %v1329, %v1385
        %v1410 = vadd.f32 %v1330, %v1388
        %v1411 = vadd.f32 %v1331, %v1391
        %v1412 = vadd.f32 %v1332, %v1394
        %v1413 = vadd.f32 %v1333, %v1397
        %v1414 = vlaneseq
        %v1415 = vshrl.u32 %v1414, 7
        %v1416 = vsub.s32 5, %v1415
        %v1417 = vrot.slane %v702, %v1416
        %v1418 = vlaneseq
        %v1419 = vshrl.u32 %v1418, 7
        %v1420 = vsub.s32 5, %v1419
        %v1421 = vrot.slane %v703, %v1420
        %v1422 = vmul.f32 %v516, %v1417
        %v1423 = vmul.f32 %v517, %v1421
        %v1424 = vmul.f32 %v518, %v1417
        %v1425 = vmul.f32 %v519, %v1421
        %v1426 = vmul.f32 %v520, %v1417
        %v1427 = vmul.f32 %v521, %v1421
        %v1428 = vmul.f32 %v522, %v1417
        %v1429 = vmul.f32 %v523, %v1421
        %v1430 = vmul.f32 %v524, %v1417
        %v1431 = vmul.f32 %v525, %v1421
        %v1432 = vmul.f32 %v526, %v1417
        %v1433 = vmul.f32 %v527, %v1421
        %v1434 = vmul.f32 %v528, %v1417
        %v1435 = vmul.f32 %v529, %v1421
        %v1436 = vmul.f32 %v530, %v1417
        %v1437 = vmul.f32 %v531, %v1421
        %v1454 = vrot.slane %v1422, 1
        %v1455 = vrot.slane %v1424, 1
        %v1456 = vsel %vm796, %v1454, %v1455
        %v1457 = vrot.slane %v1423, 1
        %v1458 = vrot.slane %v1425, 1
        %v1459 = vsel %vm796, %v1457, %v1458
        %v1460 = vrot.slane %v1426, 1
        %v1461 = vrot.slane %v1428, 1
        %v1462 = vsel %vm796, %v1460, %v1461
        %v1463 = vrot.slane %v1427, 1
        %v1464 = vrot.slane %v1429, 1
        %v1465 = vsel %vm796, %v1463, %v1464
        %v1466 = vrot.slane %v1430, 1
        %v1467 = vrot.slane %v1432, 1
        %v1468 = vsel %vm796, %v1466, %v1467
        %v1469 = vrot.slane %v1431, 1
        %v1470 = vrot.slane %v1433, 1
        %v1471 = vsel %vm796, %v1469, %v1470
        %v1472 = vrot.slane %v1434, 1
        %v1473 = vrot.slane %v1436, 1
        %v1474 = vsel %vm796, %v1472, %v1473
        %v1475 = vrot.slane %v1435, 1
        %v1476 = vrot.slane %v1437, 1
        %v1477 = vsel %vm796, %v1475, %v1476
        %v1486 = vadd.f32 %v1406, %v1456
        %v1487 = vadd.f32 %v1407, %v1459
        %v1488 = vadd.f32 %v1408, %v1462
        %v1489 = vadd.f32 %v1409, %v1465
        %v1490 = vadd.f32 %v1410, %v1468
        %v1491 = vadd.f32 %v1411, %v1471
        %v1492 = vadd.f32 %v1412, %v1474
        %v1493 = vadd.f32 %v1413, %v1477
        %v1494 = vlaneseq
        %v1495 = vshrl.u32 %v1494, 7
        %v1496 = vsub.s32 6, %v1495
        %v1497 = vrot.slane %v702, %v1496
        %v1498 = vlaneseq
        %v1499 = vshrl.u32 %v1498, 7
        %v1500 = vsub.s32 6, %v1499
        %v1501 = vrot.slane %v703, %v1500
        %v1502 = vmul.f32 %v442, %v1497
        %v1503 = vmul.f32 %v443, %v1501
        %v1504 = vmul.f32 %v444, %v1497
        %v1505 = vmul.f32 %v445, %v1501
        %v1506 = vmul.f32 %v446, %v1497
        %v1507 = vmul.f32 %v447, %v1501
        %v1508 = vmul.f32 %v448, %v1497
        %v1509 = vmul.f32 %v449, %v1501
        %v1510 = vmul.f32 %v450, %v1497
        %v1511 = vmul.f32 %v451, %v1501
        %v1512 = vmul.f32 %v452, %v1497
        %v1513 = vmul.f32 %v453, %v1501
        %v1514 = vmul.f32 %v454, %v1497
        %v1515 = vmul.f32 %v455, %v1501
        %v1516 = vmul.f32 %v456, %v1497
        %v1517 = vmul.f32 %v457, %v1501
        %v1534 = vrot.slane %v1502, 2
        %v1535 = vrot.slane %v1504, 2
        %v1536 = vsel %vm957, %v1534, %v1535
        %v1537 = vrot.slane %v1503, 2
        %v1538 = vrot.slane %v1505, 2
        %v1539 = vsel %vm957, %v1537, %v1538
        %v1540 = vrot.slane %v1506, 2
        %v1541 = vrot.slane %v1508, 2
        %v1542 = vsel %vm957, %v1540, %v1541
        %v1543 = vrot.slane %v1507, 2
        %v1544 = vrot.slane %v1509, 2
        %v1545 = vsel %vm957, %v1543, %v1544
        %v1546 = vrot.slane %v1510, 2
        %v1547 = vrot.slane %v1512, 2
        %v1548 = vsel %vm957, %v1546, %v1547
        %v1549 = vrot.slane %v1511, 2
        %v1550 = vrot.slane %v1513, 2
        %v1551 = vsel %vm957, %v1549, %v1550
        %v1552 = vrot.slane %v1514, 2
        %v1553 = vrot.slane %v1516, 2
        %v1554 = vsel %vm957, %v1552, %v1553
        %v1555 = vrot.slane %v1515, 2
        %v1556 = vrot.slane %v1517, 2
        %v1557 = vsel %vm957, %v1555, %v1556
        %v1566 = vadd.f32 %v1486, %v1536
        %v1567 = vadd.f32 %v1487, %v1539
        %v1568 = vadd.f32 %v1488, %v1542
        %v1569 = vadd.f32 %v1489, %v1545
        %v1570 = vadd.f32 %v1490, %v1548
        %v1571 = vadd.f32 %v1491, %v1551
        %v1572 = vadd.f32 %v1492, %v1554
        %v1573 = vadd.f32 %v1493, %v1557
        %v1574 = vlaneseq
        %v1575 = vshrl.u32 %v1574, 7
        %v1576 = vsub.s32 7, %v1575
        %v1577 = vrot.slane %v702, %v1576
        %v1578 = vlaneseq
        %v1579 = vshrl.u32 %v1578, 7
        %v1580 = vsub.s32 7, %v1579
        %v1581 = vrot.slane %v703, %v1580
        %v1582 = vmul.f32 %v550, %v1577
        %v1583 = vmul.f32 %v551, %v1581
        %v1584 = vmul.f32 %v552, %v1577
        %v1585 = vmul.f32 %v553, %v1581
        %v1586 = vmul.f32 %v554, %v1577
        %v1587 = vmul.f32 %v555, %v1581
        %v1588 = vmul.f32 %v556, %v1577
        %v1589 = vmul.f32 %v557, %v1581
        %v1590 = vadd.f32 %v1566, %v1582
        %v1591 = vadd.f32 %v1567, %v1583
        %v1592 = vadd.f32 %v1568, %v1584
        %v1593 = vadd.f32 %v1569, %v1585
        %v1594 = vadd.f32 %v1570, %v1586
        %v1595 = vadd.f32 %v1571, %v1587
        %v1596 = vadd.f32 %v1572, %v1588
        %v1597 = vadd.f32 %v1573, %v1589
        %v1598 = vlaneseq
        %v1599 = vshrl.u32 %v1598, 7
        %v1600 = vsub.s32 0, %v1599
        %v1601 = vrot.slane %v704, %v1600
        %v1602 = vlaneseq
        %v1603 = vshrl.u32 %v1602, 7
        %v1604 = vsub.s32 0, %v1603
        %v1605 = vrot.slane %v705, %v1604
        %v1606 = vmul.f32 %v652, %v1601
        %v1607 = vmul.f32 %v653, %v1605
        %v1608 = vmul.f32 %v654, %v1601
        %v1609 = vmul.f32 %v655, %v1605
        %v1610 = vmul.f32 %v656, %v1601
        %v1611 = vmul.f32 %v657, %v1605
        %v1612 = vmul.f32 %v658, %v1601
        %v1613 = vmul.f32 %v659, %v1605
        %v1614 = vadd.f32 %v1590, %v1606
        %v1615 = vadd.f32 %v1591, %v1607
        %v1616 = vadd.f32 %v1592, %v1608
        %v1617 = vadd.f32 %v1593, %v1609
        %v1618 = vadd.f32 %v1594, %v1610
        %v1619 = vadd.f32 %v1595, %v1611
        %v1620 = vadd.f32 %v1596, %v1612
        %v1621 = vadd.f32 %v1597, %v1613
        %v1622 = vlaneseq
        %v1623 = vshrl.u32 %v1622, 7
        %v1624 = vsub.s32 1, %v1623
        %v1625 = vrot.slane %v704, %v1624
        %v1626 = vlaneseq
        %v1627 = vshrl.u32 %v1626, 7
        %v1628 = vsub.s32 1, %v1627
        %v1629 = vrot.slane %v705, %v1628
        %v1630 = vmul.f32 %v582, %v1625
        %v1631 = vmul.f32 %v583, %v1629
        %v1632 = vmul.f32 %v584, %v1625
        %v1633 = vmul.f32 %v585, %v1629
        %v1634 = vmul.f32 %v586, %v1625
        %v1635 = vmul.f32 %v587, %v1629
        %v1636 = vmul.f32 %v588, %v1625
        %v1637 = vmul.f32 %v589, %v1629
        %v1638 = vmul.f32 %v590, %v1625
        %v1639 = vmul.f32 %v591, %v1629
        %v1640 = vmul.f32 %v592, %v1625
        %v1641 = vmul.f32 %v593, %v1629
        %v1642 = vmul.f32 %v594, %v1625
        %v1643 = vmul.f32 %v595, %v1629
        %v1644 = vmul.f32 %v596, %v1625
        %v1645 = vmul.f32 %v597, %v1629
        %v1662 = vrot.slane %v1630, 1
        %v1663 = vrot.slane %v1632, 1
        %v1664 = vsel %vm796, %v1662, %v1663
        %v1665 = vrot.slane %v1631, 1
        %v1666 = vrot.slane %v1633, 1
        %v1667 = vsel %vm796, %v1665, %v1666
        %v1668 = vrot.slane %v1634, 1
        %v1669 = vrot.slane %v1636, 1
        %v1670 = vsel %vm796, %v1668, %v1669
        %v1671 = vrot.slane %v1635, 1
        %v1672 = vrot.slane %v1637, 1
        %v1673 = vsel %vm796, %v1671, %v1672
        %v1674 = vrot.slane %v1638, 1
        %v1675 = vrot.slane %v1640, 1
        %v1676 = vsel %vm796, %v1674, %v1675
        %v1677 = vrot.slane %v1639, 1
        %v1678 = vrot.slane %v1641, 1
        %v1679 = vsel %vm796, %v1677, %v1678
        %v1680 = vrot.slane %v1642, 1
        %v1681 = vrot.slane %v1644, 1
        %v1682 = vsel %vm796, %v1680, %v1681
        %v1683 = vrot.slane %v1643, 1
        %v1684 = vrot.slane %v1645, 1
        %v1685 = vsel %vm796, %v1683, %v1684
        %v1694 = vadd.f32 %v1614, %v1664
        %v1695 = vadd.f32 %v1615, %v1667
        %v1696 = vadd.f32 %v1616, %v1670
        %v1697 = vadd.f32 %v1617, %v1673
        %v1698 = vadd.f32 %v1618, %v1676
        %v1699 = vadd.f32 %v1619, %v1679
        %v1700 = vadd.f32 %v1620, %v1682
        %v1701 = vadd.f32 %v1621, %v1685
        %v1702 = vlaneseq
        %v1703 = vshrl.u32 %v1702, 7
        %v1704 = vsub.s32 2, %v1703
        %v1705 = vrot.slane %v704, %v1704
        %v1706 = vlaneseq
        %v1707 = vshrl.u32 %v1706, 7
        %v1708 = vsub.s32 2, %v1707
        %v1709 = vrot.slane %v705, %v1708
        %v1710 = vmul.f32 %v684, %v1705
        %v1711 = vmul.f32 %v685, %v1709
        %v1712 = vmul.f32 %v686, %v1705
        %v1713 = vmul.f32 %v687, %v1709
        %v1714 = vmul.f32 %v688, %v1705
        %v1715 = vmul.f32 %v689, %v1709
        %v1716 = vmul.f32 %v690, %v1705
        %v1717 = vmul.f32 %v691, %v1709
        %v1718 = vmul.f32 %v692, %v1705
        %v1719 = vmul.f32 %v693, %v1709
        %v1720 = vmul.f32 %v694, %v1705
        %v1721 = vmul.f32 %v695, %v1709
        %v1722 = vmul.f32 %v696, %v1705
        %v1723 = vmul.f32 %v697, %v1709
        %v1724 = vmul.f32 %v698, %v1705
        %v1725 = vmul.f32 %v699, %v1709
        %v1742 = vrot.slane %v1710, 1
        %v1743 = vrot.slane %v1712, 1
        %v1744 = vsel %vm796, %v1742, %v1743
        %v1745 = vrot.slane %v1711, 1
        %v1746 = vrot.slane %v1713, 1
        %v1747 = vsel %vm796, %v1745, %v1746
        %v1748 = vrot.slane %v1714, 1
        %v1749 = vrot.slane %v1716, 1
        %v1750 = vsel %vm796, %v1748, %v1749
        %v1751 = vrot.slane %v1715, 1
        %v1752 = vrot.slane %v1717, 1
        %v1753 = vsel %vm796, %v1751, %v1752
        %v1754 = vrot.slane %v1718, 1
        %v1755 = vrot.slane %v1720, 1
        %v1756 = vsel %vm796, %v1754, %v1755
        %v1757 = vrot.slane %v1719, 1
        %v1758 = vrot.slane %v1721, 1
        %v1759 = vsel %vm796, %v1757, %v1758
        %v1760 = vrot.slane %v1722, 1
        %v1761 = vrot.slane %v1724, 1
        %v1762 = vsel %vm796, %v1760, %v1761
        %v1763 = vrot.slane %v1723, 1
        %v1764 = vrot.slane %v1725, 1
        %v1765 = vsel %vm796, %v1763, %v1764
        %v1774 = vadd.f32 %v1694, %v1744
        %v1775 = vadd.f32 %v1695, %v1747
        %v1776 = vadd.f32 %v1696, %v1750
        %v1777 = vadd.f32 %v1697, %v1753
        %v1778 = vadd.f32 %v1698, %v1756
        %v1779 = vadd.f32 %v1699, %v1759
        %v1780 = vadd.f32 %v1700, %v1762
        %v1781 = vadd.f32 %v1701, %v1765
        %v1782 = vlaneseq
        %v1783 = vshrl.u32 %v1782, 7
        %v1784 = vsub.s32 3, %v1783
        %v1785 = vrot.slane %v704, %v1784
        %v1786 = vlaneseq
        %v1787 = vshrl.u32 %v1786, 7
        %v1788 = vsub.s32 3, %v1787
        %v1789 = vrot.slane %v705, %v1788
        %v1790 = vmul.f32 %v622, %v1785
        %v1791 = vmul.f32 %v623, %v1789
        %v1792 = vmul.f32 %v624, %v1785
        %v1793 = vmul.f32 %v625, %v1789
        %v1794 = vmul.f32 %v626, %v1785
        %v1795 = vmul.f32 %v627, %v1789
        %v1796 = vmul.f32 %v628, %v1785
        %v1797 = vmul.f32 %v629, %v1789
        %v1798 = vmul.f32 %v630, %v1785
        %v1799 = vmul.f32 %v631, %v1789
        %v1800 = vmul.f32 %v632, %v1785
        %v1801 = vmul.f32 %v633, %v1789
        %v1802 = vmul.f32 %v634, %v1785
        %v1803 = vmul.f32 %v635, %v1789
        %v1804 = vmul.f32 %v636, %v1785
        %v1805 = vmul.f32 %v637, %v1789
        %v1822 = vrot.slane %v1790, 2
        %v1823 = vrot.slane %v1792, 2
        %v1824 = vsel %vm957, %v1822, %v1823
        %v1825 = vrot.slane %v1791, 2
        %v1826 = vrot.slane %v1793, 2
        %v1827 = vsel %vm957, %v1825, %v1826
        %v1828 = vrot.slane %v1794, 2
        %v1829 = vrot.slane %v1796, 2
        %v1830 = vsel %vm957, %v1828, %v1829
        %v1831 = vrot.slane %v1795, 2
        %v1832 = vrot.slane %v1797, 2
        %v1833 = vsel %vm957, %v1831, %v1832
        %v1834 = vrot.slane %v1798, 2
        %v1835 = vrot.slane %v1800, 2
        %v1836 = vsel %vm957, %v1834, %v1835
        %v1837 = vrot.slane %v1799, 2
        %v1838 = vrot.slane %v1801, 2
        %v1839 = vsel %vm957, %v1837, %v1838
        %v1840 = vrot.slane %v1802, 2
        %v1841 = vrot.slane %v1804, 2
        %v1842 = vsel %vm957, %v1840, %v1841
        %v1843 = vrot.slane %v1803, 2
        %v1844 = vrot.slane %v1805, 2
        %v1845 = vsel %vm957, %v1843, %v1844
        %v1854 = vadd.f32 %v1774, %v1824
        %v1855 = vadd.f32 %v1775, %v1827
        %v1856 = vadd.f32 %v1776, %v1830
        %v1857 = vadd.f32 %v1777, %v1833
        %v1858 = vadd.f32 %v1778, %v1836
        %v1859 = vadd.f32 %v1779, %v1839
        %v1860 = vadd.f32 %v1780, %v1842
        %v1861 = vadd.f32 %v1781, %v1845
        %v1862 = vlaneseq
        %v1863 = vshrl.u32 %v1862, 7
        %v1864 = vsub.s32 4, %v1863
        %v1865 = vrot.slane %v704, %v1864
        %v1866 = vlaneseq
        %v1867 = vshrl.u32 %v1866, 7
        %v1868 = vsub.s32 4, %v1867
        %v1869 = vrot.slane %v705, %v1868
        %v1870 = vmul.f32 %v358, %v1865
        %v1871 = vmul.f32 %v359, %v1869
        %v1872 = vmul.f32 %v360, %v1865
        %v1873 = vmul.f32 %v361, %v1869
        %v1874 = vmul.f32 %v362, %v1865
        %v1875 = vmul.f32 %v363, %v1869
        %v1876 = vmul.f32 %v364, %v1865
        %v1877 = vmul.f32 %v365, %v1869
        %v1878 = vadd.f32 %v1854, %v1870
        %v1879 = vadd.f32 %v1855, %v1871
        %v1880 = vadd.f32 %v1856, %v1872
        %v1881 = vadd.f32 %v1857, %v1873
        %v1882 = vadd.f32 %v1858, %v1874
        %v1883 = vadd.f32 %v1859, %v1875
        %v1884 = vadd.f32 %v1860, %v1876
        %v1885 = vadd.f32 %v1861, %v1877
        %v1886 = vlaneseq
        %v1887 = vshrl.u32 %v1886, 7
        %v1888 = vsub.s32 5, %v1887
        %v1889 = vrot.slane %v704, %v1888
        %v1890 = vlaneseq
        %v1891 = vshrl.u32 %v1890, 7
        %v1892 = vsub.s32 5, %v1891
        %v1893 = vrot.slane %v705, %v1892
        %v1894 = vmul.f32 %v480, %v1889
        %v1895 = vmul.f32 %v481, %v1893
        %v1896 = vmul.f32 %v482, %v1889
        %v1897 = vmul.f32 %v483, %v1893
        %v1898 = vmul.f32 %v484, %v1889
        %v1899 = vmul.f32 %v485, %v1893
        %v1900 = vmul.f32 %v486, %v1889
        %v1901 = vmul.f32 %v487, %v1893
        %v1902 = vadd.f32 %v1878, %v1894
        %v1903 = vadd.f32 %v1879, %v1895
        %v1904 = vadd.f32 %v1880, %v1896
        %v1905 = vadd.f32 %v1881, %v1897
        %v1906 = vadd.f32 %v1882, %v1898
        %v1907 = vadd.f32 %v1883, %v1899
        %v1908 = vadd.f32 %v1884, %v1900
        %v1909 = vadd.f32 %v1885, %v1901
        %v1910 = vlaneseq
        %v1911 = vshrl.u32 %v1910, 7
        %v1912 = vsub.s32 6, %v1911
        %v1913 = vrot.slane %v704, %v1912
        %v1914 = vlaneseq
        %v1915 = vshrl.u32 %v1914, 7
        %v1916 = vsub.s32 6, %v1915
        %v1917 = vrot.slane %v705, %v1916
        %v1918 = vmul.f32 %v398, %v1913
        %v1919 = vmul.f32 %v399, %v1917
        %v1920 = vmul.f32 %v400, %v1913
        %v1921 = vmul.f32 %v401, %v1917
        %v1922 = vmul.f32 %v402, %v1913
        %v1923 = vmul.f32 %v403, %v1917
        %v1924 = vmul.f32 %v404, %v1913
        %v1925 = vmul.f32 %v405, %v1917
        %v1926 = vmul.f32 %v406, %v1913
        %v1927 = vmul.f32 %v407, %v1917
        %v1928 = vmul.f32 %v408, %v1913
        %v1929 = vmul.f32 %v409, %v1917
        %v1930 = vmul.f32 %v410, %v1913
        %v1931 = vmul.f32 %v411, %v1917
        %v1932 = vmul.f32 %v412, %v1913
        %v1933 = vmul.f32 %v413, %v1917
        %v1950 = vrot.slane %v1918, 1
        %v1951 = vrot.slane %v1920, 1
        %v1952 = vsel %vm796, %v1950, %v1951
        %v1953 = vrot.slane %v1919, 1
        %v1954 = vrot.slane %v1921, 1
        %v1955 = vsel %vm796, %v1953, %v1954
        %v1956 = vrot.slane %v1922, 1
        %v1957 = vrot.slane %v1924, 1
        %v1958 = vsel %vm796, %v1956, %v1957
        %v1959 = vrot.slane %v1923, 1
        %v1960 = vrot.slane %v1925, 1
        %v1961 = vsel %vm796, %v1959, %v1960
        %v1962 = vrot.slane %v1926, 1
        %v1963 = vrot.slane %v1928, 1
        %v1964 = vsel %vm796, %v1962, %v1963
        %v1965 = vrot.slane %v1927, 1
        %v1966 = vrot.slane %v1929, 1
        %v1967 = vsel %vm796, %v1965, %v1966
        %v1968 = vrot.slane %v1930, 1
        %v1969 = vrot.slane %v1932, 1
        %v1970 = vsel %vm796, %v1968, %v1969
        %v1971 = vrot.slane %v1931, 1
        %v1972 = vrot.slane %v1933, 1
        %v1973 = vsel %vm796, %v1971, %v1972
        %v1982 = vadd.f32 %v1902, %v1952
        %v1983 = vadd.f32 %v1903, %v1955
        %v1984 = vadd.f32 %v1904, %v1958
        %v1985 = vadd.f32 %v1905, %v1961
        %v1986 = vadd.f32 %v1906, %v1964
        %v1987 = vadd.f32 %v1907, %v1967
        %v1988 = vadd.f32 %v1908, %v1970
        %v1989 = vadd.f32 %v1909, %v1973
        %v1990 = vlaneseq
        %v1991 = vshrl.u32 %v1990, 7
        %v1992 = vsub.s32 7, %v1991
        %v1993 = vrot.slane %v704, %v1992
        %v1994 = vlaneseq
        %v1995 = vshrl.u32 %v1994, 7
        %v1996 = vsub.s32 7, %v1995
        %v1997 = vrot.slane %v705, %v1996
        %v1998 = vmul.f32 %v520, %v1993
        %v1999 = vmul.f32 %v521, %v1997
        %v2000 = vmul.f32 %v522, %v1993
        %v2001 = vmul.f32 %v523, %v1997
        %v2002 = vmul.f32 %v524, %v1993
        %v2003 = vmul.f32 %v525, %v1997
        %v2004 = vmul.f32 %v526, %v1993
        %v2005 = vmul.f32 %v527, %v1997
        %v2006 = vmul.f32 %v528, %v1993
        %v2007 = vmul.f32 %v529, %v1997
        %v2008 = vmul.f32 %v530, %v1993
        %v2009 = vmul.f32 %v531, %v1997
        %v2010 = vmul.f32 %v532, %v1993
        %v2011 = vmul.f32 %v533, %v1997
        %v2012 = vmul.f32 %v534, %v1993
        %v2013 = vmul.f32 %v535, %v1997
        %v2030 = vrot.slane %v1998, 1
        %v2031 = vrot.slane %v2000, 1
        %v2032 = vsel %vm796, %v2030, %v2031
        %v2033 = vrot.slane %v1999, 1
        %v2034 = vrot.slane %v2001, 1
        %v2035 = vsel %vm796, %v2033, %v2034
        %v2036 = vrot.slane %v2002, 1
        %v2037 = vrot.slane %v2004, 1
        %v2038 = vsel %vm796, %v2036, %v2037
        %v2039 = vrot.slane %v2003, 1
        %v2040 = vrot.slane %v2005, 1
        %v2041 = vsel %vm796, %v2039, %v2040
        %v2042 = vrot.slane %v2006, 1
        %v2043 = vrot.slane %v2008, 1
        %v2044 = vsel %vm796, %v2042, %v2043
        %v2045 = vrot.slane %v2007, 1
        %v2046 = vrot.slane %v2009, 1
        %v2047 = vsel %vm796, %v2045, %v2046
        %v2048 = vrot.slane %v2010, 1
        %v2049 = vrot.slane %v2012, 1
        %v2050 = vsel %vm796, %v2048, %v2049
        %v2051 = vrot.slane %v2011, 1
        %v2052 = vrot.slane %v2013, 1
        %v2053 = vsel %vm796, %v2051, %v2052
        %v2062 = vadd.f32 %v1982, %v2032
        %v2063 = vadd.f32 %v1983, %v2035
        %v2064 = vadd.f32 %v1984, %v2038
        %v2065 = vadd.f32 %v1985, %v2041
        %v2066 = vadd.f32 %v1986, %v2044
        %v2067 = vadd.f32 %v1987, %v2047
        %v2068 = vadd.f32 %v1988, %v2050
        %v2069 = vadd.f32 %v1989, %v2053
        %v2070 = vlaneseq
        %v2071 = vshrl.u32 %v2070, 7
        %v2072 = vsub.s32 0, %v2071
        %v2073 = vrot.slane %v706, %v2072
        %v2074 = vlaneseq
        %v2075 = vshrl.u32 %v2074, 7
        %v2076 = vsub.s32 0, %v2075
        %v2077 = vrot.slane %v707, %v2076
        %v2078 = vmul.f32 %v446, %v2073
        %v2079 = vmul.f32 %v447, %v2077
        %v2080 = vmul.f32 %v448, %v2073
        %v2081 = vmul.f32 %v449, %v2077
        %v2082 = vmul.f32 %v450, %v2073
        %v2083 = vmul.f32 %v451, %v2077
        %v2084 = vmul.f32 %v452, %v2073
        %v2085 = vmul.f32 %v453, %v2077
        %v2086 = vmul.f32 %v454, %v2073
        %v2087 = vmul.f32 %v455, %v2077
        %v2088 = vmul.f32 %v456, %v2073
        %v2089 = vmul.f32 %v457, %v2077
        %v2090 = vmul.f32 %v458, %v2073
        %v2091 = vmul.f32 %v459, %v2077
        %v2092 = vmul.f32 %v460, %v2073
        %v2093 = vmul.f32 %v461, %v2077
        %v2110 = vrot.slane %v2078, 2
        %v2111 = vrot.slane %v2080, 2
        %v2112 = vsel %vm957, %v2110, %v2111
        %v2113 = vrot.slane %v2079, 2
        %v2114 = vrot.slane %v2081, 2
        %v2115 = vsel %vm957, %v2113, %v2114
        %v2116 = vrot.slane %v2082, 2
        %v2117 = vrot.slane %v2084, 2
        %v2118 = vsel %vm957, %v2116, %v2117
        %v2119 = vrot.slane %v2083, 2
        %v2120 = vrot.slane %v2085, 2
        %v2121 = vsel %vm957, %v2119, %v2120
        %v2122 = vrot.slane %v2086, 2
        %v2123 = vrot.slane %v2088, 2
        %v2124 = vsel %vm957, %v2122, %v2123
        %v2125 = vrot.slane %v2087, 2
        %v2126 = vrot.slane %v2089, 2
        %v2127 = vsel %vm957, %v2125, %v2126
        %v2128 = vrot.slane %v2090, 2
        %v2129 = vrot.slane %v2092, 2
        %v2130 = vsel %vm957, %v2128, %v2129
        %v2131 = vrot.slane %v2091, 2
        %v2132 = vrot.slane %v2093, 2
        %v2133 = vsel %vm957, %v2131, %v2132
        %v2142 = vadd.f32 %v2062, %v2112
        %v2143 = vadd.f32 %v2063, %v2115
        %v2144 = vadd.f32 %v2064, %v2118
        %v2145 = vadd.f32 %v2065, %v2121
        %v2146 = vadd.f32 %v2066, %v2124
        %v2147 = vadd.f32 %v2067, %v2127
        %v2148 = vadd.f32 %v2068, %v2130
        %v2149 = vadd.f32 %v2069, %v2133
        %2150 = vst [vmem:[%s309] sm:$0xff] %v2142
        %vm2151 = vcmask 130048
        %2152 = vst.msk [vmem:[%s309 + $0x8] sm:$0xff] %vm2151, %v2143
        %2153 = vst [vmem:[%s309 + $0x10] sm:$0xff] %v2144
        %2154 = vst.msk [vmem:[%s309 + $0x18] sm:$0xff] %vm2151, %v2145
        %2155 = vst [vmem:[%s309 + $0x20] sm:$0xff] %v2146
        %2156 = vst.msk [vmem:[%s309 + $0x28] sm:$0xff] %vm2151, %v2147
        %2157 = vst [vmem:[%s309 + $0x30] sm:$0xff] %v2148
        %2158 = vst.msk [vmem:[%s309 + $0x38] sm:$0xff] %vm2151, %v2149
        %v2159 = vadd.f32 %v2142, %v2144
        %v2160 = vadd.f32 %v2159, %v2146
        %v2161 = vadd.f32 %v2160, %v2148
        %v2162 = vrot.slane %v2161, 4
        %v2163 = vadd.f32 %v2161, %v2162
        %v2164 = vrot.slane %v2163, 2
        %v2165 = vadd.f32 %v2163, %v2164
        %v2166 = vrot.slane %v2165, 1
        %v2167 = vadd.f32 %v2165, %v2166
        %v2168 = vsel %vm2151, %v2143, 0.0
        %v2169 = vsel %vm2151, %v2145, 0.0
        %v2170 = vadd.f32 %v2168, %v2169
        %v2171 = vsel %vm2151, %v2147, 0.0
        %v2172 = vadd.f32 %v2170, %v2171
        %v2173 = vsel %vm2151, %v2149, 0.0
        %v2174 = vadd.f32 %v2172, %v2173
        %v2175 = vrot.slane %v2174, 4
        %v2176 = vadd.f32 %v2174, %v2175
        %v2177 = vrot.slane %v2176, 2
        %v2178 = vadd.f32 %v2176, %v2177
        %v2179 = vrot.slane %v2178, 1
        %v2180 = vadd.f32 %v2178, %v2179
        %v2181 = vmul.f32 %v2142, %v2142
        %v2182 = vmul.f32 %v2143, %v2143
        %v2183 = vmul.f32 %v2144, %v2144
        %v2184 = vmul.f32 %v2145, %v2145
        %v2185 = vmul.f32 %v2146, %v2146
        %v2186 = vmul.f32 %v2147, %v2147
        %v2187 = vmul.f32 %v2148, %v2148
        %v2188 = vmul.f32 %v2149, %v2149
        %v2189 = vadd.f32 %v2181, %v2183
        %v2190 = vadd.f32 %v2189, %v2185
        %v2191 = vadd.f32 %v2190, %v2187
        %v2192 = vrot.slane %v2191, 4
        %v2193 = vadd.f32 %v2191, %v2192
        %v2194 = vrot.slane %v2193, 2
        %v2195 = vadd.f32 %v2193, %v2194
        %v2196 = vrot.slane %v2195, 1
        %v2197 = vadd.f32 %v2195, %v2196
        %v2198 = vsel %vm2151, %v2182, 0.0
        %v2199 = vsel %vm2151, %v2184, 0.0
        %v2200 = vadd.f32 %v2198, %v2199
        %v2201 = vsel %vm2151, %v2186, 0.0
        %v2202 = vadd.f32 %v2200, %v2201
        %v2203 = vsel %vm2151, %v2188, 0.0
        %v2204 = vadd.f32 %v2202, %v2203
        %v2205 = vrot.slane %v2204, 4
        %v2206 = vadd.f32 %v2204, %v2205
        %v2207 = vrot.slane %v2206, 2
        %v2208 = vadd.f32 %v2206, %v2207
        %v2209 = vrot.slane %v2208, 1
        %v2210 = vadd.f32 %v2208, %v2209
        %v2213 = vcombine.low %v2167, %v2180
        %v2215 = vunpack.c.l.s4 1966171168
        %v2216 = vunpack.c.0.s8 %v2215
        %v2217 = vlaneseq
        %v2218 = vshrl.u32 %v2217, 7
        %v2219 = vsub.s32 %v2216, %v2218
        %v2220 = vrot.slane %v2213, %v2219
        %v2222 = vunpack.c.l.s4 1966171168
        %v2223 = vunpack.c.0.s8 %v2222
        %v2224 = vlaneseq
        %v2225 = vshrl.u32 %v2224, 7
        %v2226 = vsub.s32 %v2223, %v2225
        %v2227 = vrot.slane %v2220, %v2226
        %v2229 = vlaneseq
        %vm2230 = vcmp.ge.s32.totalorder %v2229, 0
        %vm2231 = vcmp.lt.s32.totalorder %v2229, 144
        %vm2232 = vmand %vm2230, %vm2231
        %2233 = vst.msk [vmem:[%s316] ss:$2 sm:$0x3] %vm2232, %v2227
        %v2236 = vcombine.low %v2197, %v2210
        %v2238 = vunpack.c.l.s4 1966171168
        %v2239 = vunpack.c.0.s8 %v2238
        %v2240 = vlaneseq
        %v2241 = vshrl.u32 %v2240, 7
        %v2242 = vsub.s32 %v2239, %v2241
        %v2243 = vrot.slane %v2236, %v2242
        %v2245 = vunpack.c.l.s4 1966171168
        %v2246 = vunpack.c.0.s8 %v2245
        %v2247 = vlaneseq
        %v2248 = vshrl.u32 %v2247, 7
        %v2249 = vsub.s32 %v2246, %v2248
        %v2250 = vrot.slane %v2243, %v2249
        %s2252 = scalar_lea.vmem %s316, 1 [#allocation4]
        %2253 = vst.msk [vmem:[%s2252] ss:$2 sm:$0x3] %vm2232, %v2250
        %s2254 = sand.u32 %s171, 1
        %s2255 = scalar_lea.sflag [#allocation3], %s2254
        %s2256 = sand.u32 %s171, 1
        %s2257 = smul.addr %s2256, 64
        %s2258 = scalar_lea.vmem [#allocation2], %s2257
        %s2259 = sand.u32 %s199, 1
        %s2260 = scalar_lea.sflag [#allocation5], %s2259
        %s2261 = sand.u32 %s199, 1
        %s2262 = smul.addr %s2261, 4
        %s2263 = scalar_lea.vmem [#allocation4], %s2262
        // Predicated region
        $region41: #{tpu_custom_call.1} parent=39 // pred_check
          %p2264 = pneg %p181
        $region42: #{tpu_custom_call.1} parent=39 // pred_check_branch
          %2266 = sbr.rel (%p2264) target = $region44
        $region43: #{tpu_custom_call.1} parent=39 // pred_region
          %s2267 = smul.u32 4, %s29
          %s2269 = ssub.s32 1024, 1024
          %2270 = vsyncadd %s2255, %s2269
          %s2271 = smul.addr %s2267, 2
          %s2272 = smul.addr %s28, 16
          %s2273 = sadd.s32 %s2271, %s2272
          %s2274 = smul.addr %s2273, 128
          %s2275 = scalar_lea.hbm %s5, %s2274
          %s2276 = sshll.u32 %s2258, 4
          %s2277 = int_to_ptr.vmem [resolvable:$true] %s2276
          %2282 = dma.vmem_to_hbm [thread:$0]  %s2277, 1024, %s2275, %s2255, 256, 256, 16
        $region44: #{tpu_custom_call.1} parent=39 // pred_fallthru
          _
        // Predicated region
        $region45: #{tpu_custom_call.1} parent=39 // pred_check
          %p2283 = pneg %p209
        $region46: #{tpu_custom_call.1} parent=39 // pred_check_branch
          %2285 = sbr.rel (%p2283) target = $region48
        $region47: #{tpu_custom_call.1} parent=39 // pred_region
          %s2287 = ssub.s32 64, 64
          %2288 = vsyncadd %s2260, %s2287
          %s2289 = smul.addr %s29, 2
          %s2290 = smul.addr %s28, 4
          %s2291 = sadd.s32 %s2289, %s2290
          %s2292 = smul.addr %s2291, 32
          %s2293 = scalar_lea.hbm %s6, %s2292
          %s2295 = sshll.u32 %s2263, 4
          %s2296 = int_to_ptr.vmem [resolvable:$true] %s2295
          %2298 = dma.vmem_to_hbm [thread:$0]  %s2296, 64, %s2293, %s2260
        $region48: #{tpu_custom_call.1} parent=39 // pred_fallthru
          _
      $region40: #{tpu_custom_call.1} parent=5 // pred_fallthru
        _
      %p2299 = scmp.le.s32.totalorder 2, %s19
      // Predicated region
      $region49: #{tpu_custom_call.1} parent=5 // pred_check
        %p2300 = pneg %p2299
      $region50: #{tpu_custom_call.1} parent=5 // pred_check_branch
        %2302 = sbr.rel (%p2300) target = $region52
      $region51: #{tpu_custom_call.1} parent=5 // pred_region
        %s2303 = ssub.s32 %s19, 2
        // Predicated region
        $region53: #{tpu_custom_call.1} parent=51 // pred_check
          %p2304 = pneg %p187
        $region54: #{tpu_custom_call.1} parent=51 // pred_check_branch
          %2306 = sbr.rel (%p2304) target = $region56
        $region55: #{tpu_custom_call.1} parent=51 // pred_region
          %s2307 = sand.u32 %s172, 1
          %s2308 = scalar_lea.sflag [#allocation3], %s2307
          %s2309 = sand.u32 %s172, 1
          %s2310 = smul.addr %s2309, 64
          %s2311 = scalar_lea.vmem [#allocation2], %s2310
          %2312 = dma.done %s2308, 1024
        $region56: #{tpu_custom_call.1} parent=51 // pred_fallthru
          _
        // Predicated region
        $region57: #{tpu_custom_call.1} parent=51 // pred_check
          %p2313 = pneg %p215
        $region58: #{tpu_custom_call.1} parent=51 // pred_check_branch
          %2315 = sbr.rel (%p2313) target = $region60
        $region59: #{tpu_custom_call.1} parent=51 // pred_region
          %s2316 = sand.u32 %s200, 1
          %s2317 = scalar_lea.sflag [#allocation5], %s2316
          %s2318 = sand.u32 %s200, 1
          %s2319 = smul.addr %s2318, 4
          %s2320 = scalar_lea.vmem [#allocation4], %s2319
          %2321 = dma.done %s2317, 64
        $region60: #{tpu_custom_call.1} parent=51 // pred_fallthru
          _
      $region52: #{tpu_custom_call.1} parent=5 // pred_fallthru
        _
    $region6: #{tpu_custom_call.1} parent=1 // loop_footer
      %s23 = sadd.s32 1, %s19
    $region7: #{tpu_custom_call.1} parent=1 // loop_footer_branch
      %18 = sbr.rel target = $region3
    $region8: #{tpu_custom_call.1} parent=1 // loop_exit
      _
    %2322 = vsyncpa [#allocation3], 1
    %s2323 = scalar_lea.sflag [#allocation3], 1
    %2324 = vsyncpa %s2323, 1
    %2325 = vsyncpa [#allocation5], 1
    %s2326 = scalar_lea.sflag [#allocation5], 1
    %2327 = vsyncpa %s2326, 1

</llo_original>
